<compile_context>
chip_gen: v7x
topology: tpu7x:2x2x1
jax: 0.10.0
libtpu: 0.0.40
codegen_flags: <defaults>
</compile_context>

<pallas_src>
import functools
import math

import jax
import jax.numpy as jnp
from jax.experimental import pallas as pl
from jax.experimental.pallas import tpu as pltpu


# ------------------------------ helpers ------------------------------------ #
def _round_up(n, m):
    return ((n + m - 1) // m) * m


def _pad_to(x, shape):
    x = jnp.asarray(x, jnp.float32)
    pads = [(0, s - d) for d, s in zip(x.shape, shape)]
    return jnp.pad(x, pads)


def _row384(v):
    v = jnp.asarray(v, jnp.float32).reshape(-1)
    return jnp.pad(v, (0, 384 - v.shape[0])).reshape(1, 384)


def _cat128(a, b):
    a = jnp.asarray(a, jnp.float32).reshape(-1)
    b = jnp.asarray(b, jnp.float32).reshape(-1)
    return jnp.concatenate([jnp.pad(a, (0, 128 - a.shape[0])),
                            jnp.pad(b, (0, 128 - b.shape[0]))])


def _default_fuse_encoder_l2():
    """Block-diagonal 256-wide encoder-L2 fusion is a win on v6e/v7x (2x256^2
    MXU) but doubles real FLOPs on v5e (4x128^2 MXU)."""
    try:
        kind = jax.devices()[0].device_kind.lower()
    except Exception:
        return True
    return "v5" not in kind


# ------------------------------ kernel -------------------------------------- #
def dqn_kernel(x_ref, small_ref, w256_ref, w384_ref, w128_ref, q_ref, *,
               fuse_l2=True):
    f32 = jnp.float32
    bf16 = jnp.bfloat16
    relu = lambda v: jnp.maximum(v, 0.0)

    def mm(act_bf16, w):
        # bf16 x bf16 MXU matmul, f32 accumulation.
        return jnp.dot(act_bf16, w, preferred_element_type=f32)

    # ---- small f32 slab layout (rows of a (16, 384) array)
    b_enc1 = small_ref[0:1, 0:256]     # [ab1 | gb1]
    b_enc2 = small_ref[1:2, 0:256]     # [ab2 | gb2]
    cb1 = small_ref[2:3, 0:256]
    cb2 = small_ref[3:4, 0:384]
    cb3 = small_ref[4:5, 0:128]
    cb4 = small_ref[5:6, 0:128]
    r_a0 = small_ref[6:7, 0:256]       # [aw1[0] | 0]
    r_a1 = small_ref[7:8, 0:256]       # [aw1[1] | 0]
    r_g0 = small_ref[8:9, 0:256]       # [0 | gw1[0]]
    r_g1 = small_ref[9:10, 0:256]      # [0 | gw1[1]]

    x = x_ref[...]                     # (TB, 4) = [agent0, agent1, goal0, goal1]

    # encoder layer 1 (contraction depth 2): broadcast VPU FMAs, f32 math,
    # producing the fused a1||g1 layout directly in 256 lanes.
    enc1 = relu(x[:, 0:1] * r_a0 + x[:, 1:2] * r_a1
                + x[:, 2:3] * r_g0 + x[:, 3:4] * r_g1 + b_enc1)      # (TB, 256)
    enc1 = enc1.astype(bf16)

    # encoder layer 2 (no ReLU in the original module).
    if fuse_l2:
        # one 256-wide MXU pass on the block-diagonal weight (v6e/v7x).
        enc2 = mm(enc1, w256_ref[0:256, :]) + b_enc2                 # (TB, 256)
    else:
        # v5e: two 128-wide matmuls on the diagonal blocks of the same slab.
        a2 = mm(enc1[:, 0:128], w256_ref[0:128, 0:128])
        g2 = mm(enc1[:, 128:256], w256_ref[128:256, 128:256])
        enc2 = jnp.concatenate([a2, g2], axis=1) + b_enc2            # (TB, 256)
    enc2 = enc2.astype(bf16)

    # head layer 1: single (TB,256)@(256,256) replaces concat + 2 matmuls.
    h = relu(mm(enc2, w256_ref[256:512, :]) + cb1).astype(bf16)      # (TB, 256)
    # head layer 2: 256 -> 384 (352 padded).
    h = relu(mm(h, w384_ref[...]) + cb2).astype(bf16)                # (TB, 384)
    # head layer 3: 384 -> 128 (64 padded).
    h = relu(mm(h, w128_ref[0:384, :]) + cb3).astype(bf16)           # (TB, 128)
    # head layer 4: 128 -> 128 (4 real); store only the first 8 lanes.
    q = mm(h, w128_ref[384:512, :]) + cb4                            # (TB, 128) f32
    q_ref[...] = q[:, 0:8]


# ------------------------------ wrapper ------------------------------------- #
def state_goal_augmented_dqn_forward(agent_position, env_goal_position, packed,
                                     *, tile_b=1024, fuse_encoder_l2=None):
    """Returns (q, None, None, None) exactly like the PyTorch module."""
    slab_small, slab256, slab384, slab128 = packed
    if fuse_encoder_l2 is None:
        fuse_encoder_l2 = _default_fuse_encoder_l2()

    B = agent_position.shape[0]
    x = jnp.concatenate([agent_position.astype(jnp.float32),
                         env_goal_position.astype(jnp.float32)], axis=1)  # (B, 4)

    B8 = _round_up(B, 8)
    TILE_B = _round_up(max(min(tile_b, B8), 8), 8)
    if B8 >= 16:
        # keep >= 2 grid tiles so both v7x TensorCores get work.
        TILE_B = min(TILE_B, _round_up((B8 + 1) // 2, 8))
    B_pad = _round_up(B8, TILE_B)
    x_pad = _pad_to(x, (B_pad, 4))
    grid = (B_pad // TILE_B,)

    # advisory cost hint for XLA scheduling around the custom call
    flops = 2 * B_pad * (2 * 81 + 81 * 100 + 2 * 64 + 64 * 100
                         + 200 * 256 + 256 * 352 + 352 * 64 + 64 * 4)
    bytes_accessed = int(x_pad.size * 4 + slab_small.size * 4
                         + slab256.size * 2 + slab384.size * 2
                         + slab128.size * 2 + B_pad * 8 * 4)

    kernel = functools.partial(dqn_kernel, fuse_l2=fuse_encoder_l2)

    q_pad = pl.pallas_call(
        kernel,
        out_shape=jax.ShapeDtypeStruct((B_pad, 8), jnp.float32),
        grid_spec=pltpu.PrefetchScalarGridSpec(
            num_scalar_prefetch=0,
            grid=grid,
            in_specs=[
                pl.BlockSpec((TILE_B, 4), lambda i: (i, 0)),
                # weight slabs: constant index_map -> DMA'd once, VMEM resident
                pl.BlockSpec(slab_small.shape, lambda i: (0, 0)),
                pl.BlockSpec(slab256.shape, lambda i: (0, 0)),
                pl.BlockSpec(slab384.shape, lambda i: (0, 0)),
                pl.BlockSpec(slab128.shape, lambda i: (0, 0)),
            ],
            out_specs=pl.BlockSpec((TILE_B, 8), lambda i: (i, 0)),
        ),
        compiler_params=pltpu.CompilerParams(
            dimension_semantics=("parallel",),      # megacore sharding on v7x
            vmem_limit_bytes=32 * 1024 * 1024,      # safe on v5e/v6e/v7x
        ),
        cost_estimate=pl.CostEstimate(flops=flops, transcendentals=0,
                                      bytes_accessed=bytes_accessed),
    )(x_pad, slab_small, slab256, slab384, slab128)

    q = q_pad[:B, :4]
    return q, None, None, None


# ------------------------------ params -------------------------------------- #
def init_linear(key, fan_in, fan_out):
    """PyTorch-style Linear init; weight stored as (in, out), bias (1, out)."""
    kw, kb = jax.random.split(key)
    bound = 1.0 / math.sqrt(fan_in)
    w = jax.random.uniform(kw, (fan_in, fan_out), jnp.float32, -bound, bound)
    b = jax.random.uniform(kb, (1, fan_out), jnp.float32, -bound, bound)
    return w, b


def make_params(key, state_size=2, goal_size=2, features_size=100,
                num_actions=4, H2_size=352, H3_size=64):
    keys = jax.random.split(key, 8)
    p = {}
    p["aw1"], p["ab1"] = init_linear(keys[0], state_size, 81)
    p["aw2"], p["ab2"] = init_linear(keys[1], 81, features_size)
    p["gw1"], p["gb1"] = init_linear(keys[2], goal_size, 64)
    p["gw2"], p["gb2"] = init_linear(keys[3], 64, features_size)
    p["cw1"], p["cb1"] = init_linear(keys[4], 2 * features_size, 256)
    p["cw2"], p["cb2"] = init_linear(keys[5], 256, H2_size)
    p["cw3"], p["cb3"] = init_linear(keys[6], H2_size, H3_size)
    p["cw4"], p["cb4"] = init_linear(keys[7], H3_size, num_actions)
    return p


def pack_params(p, weights_dtype=jnp.bfloat16):
    """Pad to lane multiples and pack into 4 contiguous slabs.

    slab256 (512, 256) bf16: rows   0:256 = block-diagonal encoder-L2 weight
                                            ([aw2|0 ; 0|gw2], off-diagonal EXACTLY 0)
                             rows 256:512 = cw1 with the two halves placed at
                                            rows 0:100 and 128:228 (concat layout)
    slab384 (256, 384) bf16: cw2 padded
    slab128 (512, 128) bf16: rows 0:384 = cw3 padded, rows 384:512 = cw4 padded
    slab_small (16, 384) f32: biases + K=2 first-layer weight rows (see kernel)
    """
    # encoder layer 2: block-diagonal (256, 256)
    w_enc = jnp.zeros((256, 256), jnp.float32)
    w_enc = w_enc.at[0:81, 0:100].set(jnp.asarray(p["aw2"], jnp.float32))
    w_enc = w_enc.at[128:192, 128:228].set(jnp.asarray(p["gw2"], jnp.float32))
    # head layer 1: cw1 split at the concat boundary (row 100 -> lane 128)
    w_h1 = jnp.zeros((256, 256), jnp.float32)
    w_h1 = w_h1.at[0:100, :].set(jnp.asarray(p["cw1"][:100], jnp.float32))
    w_h1 = w_h1.at[128:228, :].set(jnp.asarray(p["cw1"][100:], jnp.float32))
    slab256 = jnp.concatenate([w_enc, w_h1], axis=0).astype(weights_dtype)     # (512,256)

    slab384 = _pad_to(p["cw2"], (256, 384)).astype(weights_dtype)              # (256,384)

    w3 = _pad_to(p["cw3"], (384, 128))
    w4 = _pad_to(p["cw4"], (128, 128))
    slab128 = jnp.concatenate([w3, w4], axis=0).astype(weights_dtype)          # (512,128)

    zeros128 = jnp.zeros((128,), jnp.float32)
    rows = [
        _row384(_cat128(p["ab1"], p["gb1"])),       # 0: b_enc1
        _row384(_cat128(p["ab2"], p["gb2"])),       # 1: b_enc2
        _row384(p["cb1"]),                          # 2
        _row384(p["cb2"]),                          # 3
        _row384(p["cb3"]),                          # 4
        _row384(p["cb4"]),                          # 5
        _row384(_cat128(p["aw1"][0], zeros128)),    # 6: r_a0
        _row384(_cat128(p["aw1"][1], zeros128)),    # 7: r_a1
        _row384(_cat128(zeros128, p["gw1"][0])),    # 8: r_g0
        _row384(_cat128(zeros128, p["gw1"][1])),    # 9: r_g1
        jnp.zeros((6, 384), jnp.float32),           # pad to 16 rows
    ]
    slab_small = jnp.concatenate(rows, axis=0)                                 # (16,384) f32
    return slab_small, slab256, slab384, slab128


# ------------------------------ references ---------------------------------- #
def reference_forward_f32(agent, goal, p):
    """Original module semantics, pure f32."""
    relu = lambda v: jnp.maximum(v, 0.0)
    a = relu(agent @ p["aw1"] + p["ab1"]) @ p["aw2"] + p["ab2"]
    g = relu(goal @ p["gw1"] + p["gb1"]) @ p["gw2"] + p["gb2"]
    h = jnp.concatenate([a, g], axis=1)
    h = relu(h @ p["cw1"] + p["cb1"])
    h = relu(h @ p["cw2"] + p["cb2"])
    h = relu(h @ p["cw3"] + p["cb3"])
    return h @ p["cw4"] + p["cb4"]


def reference_forward_packed(agent, goal, packed):
    """Mirrors the kernel's exact math (bf16 matmul inputs, f32 accumulation)."""
    slab_small, slab256, slab384, slab128 = packed
    relu = lambda v: jnp.maximum(v, 0.0)
    bf16 = jnp.bfloat16
    mm = lambda a, w: jnp.dot(a.astype(bf16), w, preferred_element_type=jnp.float32)
    r = lambda i, w: slab_small[i:i + 1, :w]
    x = jnp.concatenate([agent, goal], axis=1).astype(jnp.float32)
    enc1 = relu(x[:, 0:1] * r(6, 256) + x[:, 1:2] * r(7, 256)
                + x[:, 2:3] * r(8, 256) + x[:, 3:4] * r(9, 256) + r(0, 256))
    enc2 = mm(enc1, slab256[0:256]) + r(1, 256)
    h = relu(mm(enc2, slab256[256:512]) + r(2, 256))
    h = relu(mm(h, slab384) + r(3, 384))
    h = relu(mm(h, slab128[0:384]) + r(4, 128))
    q = mm(h, slab128[384:512]) + r(5, 128)
    return q[:, :4]


# ------------------------------ test ---------------------------------------- #
if __name__ == "__main__":
    key = jax.random.PRNGKey(0)
    k_params, k_agent, k_goal = jax.random.split(key, 3)

    raw_params = make_params(k_params)
    packed = pack_params(raw_params)               # bf16 weights for the MXU

    for B in (8, 40):                              # single-tile and multi-tile paths
        k_a, k_g = jax.random.split(jax.random.fold_in(k_agent, B))
        agent_position = jax.random.normal(k_a, (B, 2), jnp.float32)
        env_goal_position = jax.random.normal(k_g, (B, 2), jnp.float32)

        q, _, _, _ = state_goal_augmented_dqn_forward(
            agent_position, env_goal_position, packed)
        q = jax.block_until_ready(q)
        assert q.shape == (B, 4)

        # Tight check against a JAX re-implementation of the kernel's math.
        q_ref_packed = reference_forward_packed(agent_position, env_goal_position, packed)
        assert jnp.allclose(q, q_ref_packed, atol=1e-3, rtol=1e-3), \
            f"mismatch vs packed reference (B={B})"

        # Loose check against the original f32 module semantics (bf16 weights
        # are an intentional precision trade-off).
        q_ref_f32 = reference_forward_f32(agent_position, env_goal_position, raw_params)
        assert jnp.allclose(q, q_ref_f32, atol=5e-2, rtol=5e-2), \
            f"mismatch vs f32 module reference (B={B})"

    print("KERNEL_OK")
</pallas_src>

<mosaic_0001>
module attributes {stable_mosaic.version = 11 : i64} {
  func.func @dqn_kernel(%arg0: i32, %arg1: memref<8x4xf32, #tpu.memory_space<vmem>>, %arg2: memref<16x384xf32, #tpu.memory_space<vmem>>, %arg3: memref<512x256xbf16, #tpu.memory_space<vmem>>, %arg4: memref<256x384xbf16, #tpu.memory_space<vmem>>, %arg5: memref<512x128xbf16, #tpu.memory_space<vmem>>, %arg6: memref<8x8xf32, #tpu.memory_space<vmem>>) attributes {dimension_semantics = [#tpu.dimension_semantics<parallel>], iteration_bounds = array<i64: 1>, scalar_prefetch = 0 : i64, scratch_operands = 0 : i64, tpu.core_type = #tpu.core_type<tc>, window_params = [{transform_indices = @transform_0, window_bounds = array<i64: 8, 4>}, {pipeline_mode = #tpu.pipeline_mode<synchronous>, transform_indices = @transform_1, window_bounds = array<i64: 16, 384>}, {pipeline_mode = #tpu.pipeline_mode<synchronous>, transform_indices = @transform_2, window_bounds = array<i64: 512, 256>}, {pipeline_mode = #tpu.pipeline_mode<synchronous>, transform_indices = @transform_3, window_bounds = array<i64: 256, 384>}, {pipeline_mode = #tpu.pipeline_mode<synchronous>, transform_indices = @transform_4, window_bounds = array<i64: 512, 128>}, {transform_indices = @transform_5, window_bounds = array<i64: 8, 8>}]} {
    %c0 = arith.constant 0 : index
    %c0_0 = arith.constant 0 : index
    %0 = vector.load %arg2[%c0, %c0_0] : memref<16x384xf32, #tpu.memory_space<vmem>>, vector<1x256xf32>
    %c1 = arith.constant 1 : index
    %c0_1 = arith.constant 0 : index
    %1 = vector.load %arg2[%c1, %c0_1] : memref<16x384xf32, #tpu.memory_space<vmem>>, vector<1x256xf32>
    %c2 = arith.constant 2 : index
    %c0_2 = arith.constant 0 : index
    %2 = vector.load %arg2[%c2, %c0_2] : memref<16x384xf32, #tpu.memory_space<vmem>>, vector<1x256xf32>
    %c3 = arith.constant 3 : index
    %c0_3 = arith.constant 0 : index
    %3 = vector.load %arg2[%c3, %c0_3] : memref<16x384xf32, #tpu.memory_space<vmem>>, vector<1x384xf32>
    %c4 = arith.constant 4 : index
    %c0_4 = arith.constant 0 : index
    %4 = vector.load %arg2[%c4, %c0_4] : memref<16x384xf32, #tpu.memory_space<vmem>>, vector<1x128xf32>
    %c5 = arith.constant 5 : index
    %c0_5 = arith.constant 0 : index
    %5 = vector.load %arg2[%c5, %c0_5] : memref<16x384xf32, #tpu.memory_space<vmem>>, vector<1x128xf32>
    %c6 = arith.constant 6 : index
    %c0_6 = arith.constant 0 : index
    %6 = vector.load %arg2[%c6, %c0_6] : memref<16x384xf32, #tpu.memory_space<vmem>>, vector<1x256xf32>
    %c7 = arith.constant 7 : index
    %c0_7 = arith.constant 0 : index
    %7 = vector.load %arg2[%c7, %c0_7] : memref<16x384xf32, #tpu.memory_space<vmem>>, vector<1x256xf32>
    %c8 = arith.constant 8 : index
    %c0_8 = arith.constant 0 : index
    %8 = vector.load %arg2[%c8, %c0_8] : memref<16x384xf32, #tpu.memory_space<vmem>>, vector<1x256xf32>
    %c9 = arith.constant 9 : index
    %c0_9 = arith.constant 0 : index
    %9 = vector.load %arg2[%c9, %c0_9] : memref<16x384xf32, #tpu.memory_space<vmem>>, vector<1x256xf32>
    %c0_10 = arith.constant 0 : index
    %c0_11 = arith.constant 0 : index
    %10 = vector.load %arg1[%c0_10, %c0_11] : memref<8x4xf32, #tpu.memory_space<vmem>>, vector<8x4xf32>
    %11 = vector.extract_strided_slice %10 {offsets = [0, 0], sizes = [8, 1], strides = [1, 1]} : vector<8x4xf32> to vector<8x1xf32>
    %12 = vector.broadcast %11 : vector<8x1xf32> to vector<8x256xf32>
    %13 = vector.broadcast %6 : vector<1x256xf32> to vector<8x256xf32>
    %14 = arith.mulf %12, %13 : vector<8x256xf32>
    %15 = vector.extract_strided_slice %10 {offsets = [0, 1], sizes = [8, 1], strides = [1, 1]} : vector<8x4xf32> to vector<8x1xf32>
    %16 = vector.broadcast %15 : vector<8x1xf32> to vector<8x256xf32>
    %17 = vector.broadcast %7 : vector<1x256xf32> to vector<8x256xf32>
    %18 = arith.mulf %16, %17 : vector<8x256xf32>
    %19 = arith.addf %14, %18 : vector<8x256xf32>
    %20 = vector.extract_strided_slice %10 {offsets = [0, 2], sizes = [8, 1], strides = [1, 1]} : vector<8x4xf32> to vector<8x1xf32>
    %21 = vector.broadcast %20 : vector<8x1xf32> to vector<8x256xf32>
    %22 = vector.broadcast %8 : vector<1x256xf32> to vector<8x256xf32>
    %23 = arith.mulf %21, %22 : vector<8x256xf32>
    %24 = arith.addf %19, %23 : vector<8x256xf32>
    %25 = vector.extract_strided_slice %10 {offsets = [0, 3], sizes = [8, 1], strides = [1, 1]} : vector<8x4xf32> to vector<8x1xf32>
    %26 = vector.broadcast %25 : vector<8x1xf32> to vector<8x256xf32>
    %27 = vector.broadcast %9 : vector<1x256xf32> to vector<8x256xf32>
    %28 = arith.mulf %26, %27 : vector<8x256xf32>
    %29 = arith.addf %24, %28 : vector<8x256xf32>
    %30 = vector.broadcast %0 : vector<1x256xf32> to vector<8x256xf32>
    %31 = arith.addf %29, %30 : vector<8x256xf32>
    %cst = arith.constant 0.000000e+00 : f32
    %32 = vector.broadcast %cst : f32 to vector<8x256xf32>
    %33 = arith.maximumf %31, %32 : vector<8x256xf32>
    %34 = arith.truncf %33 : vector<8x256xf32> to vector<8x256xbf16>
    %c0_12 = arith.constant 0 : index
    %c0_13 = arith.constant 0 : index
    %35 = vector.load %arg3[%c0_12, %c0_13] : memref<512x256xbf16, #tpu.memory_space<vmem>>, vector<256x256xbf16>
    %cst_14 = arith.constant dense<0.000000e+00> : vector<8x256xf32>
    %36 = tpu.matmul %34, %35, %cst_14 {dimension_numbers = #tpu.dot_dimension_numbers<[1], [0], [0], [1], [0, 0, 1, 1], [], []>} : vector<8x256xbf16>, vector<256x256xbf16>, vector<8x256xf32> -> vector<8x256xf32>
    %37 = vector.broadcast %1 : vector<1x256xf32> to vector<8x256xf32>
    %38 = arith.addf %36, %37 : vector<8x256xf32>
    %39 = arith.truncf %38 : vector<8x256xf32> to vector<8x256xbf16>
    %c256 = arith.constant 256 : index
    %c0_15 = arith.constant 0 : index
    %40 = vector.load %arg3[%c256, %c0_15] : memref<512x256xbf16, #tpu.memory_space<vmem>>, vector<256x256xbf16>
    %cst_16 = arith.constant dense<0.000000e+00> : vector<8x256xf32>
    %41 = tpu.matmul %39, %40, %cst_16 {dimension_numbers = #tpu.dot_dimension_numbers<[1], [0], [0], [1], [0, 0, 1, 1], [], []>} : vector<8x256xbf16>, vector<256x256xbf16>, vector<8x256xf32> -> vector<8x256xf32>
    %42 = vector.broadcast %2 : vector<1x256xf32> to vector<8x256xf32>
    %43 = arith.addf %41, %42 : vector<8x256xf32>
    %cst_17 = arith.constant 0.000000e+00 : f32
    %44 = vector.broadcast %cst_17 : f32 to vector<8x256xf32>
    %45 = arith.maximumf %43, %44 : vector<8x256xf32>
    %46 = arith.truncf %45 : vector<8x256xf32> to vector<8x256xbf16>
    %c0_18 = arith.constant 0 : index
    %c0_19 = arith.constant 0 : index
    %47 = vector.load %arg4[%c0_18, %c0_19] : memref<256x384xbf16, #tpu.memory_space<vmem>>, vector<256x384xbf16>
    %cst_20 = arith.constant dense<0.000000e+00> : vector<8x384xf32>
    %48 = tpu.matmul %46, %47, %cst_20 {dimension_numbers = #tpu.dot_dimension_numbers<[1], [0], [0], [1], [0, 0, 1, 1], [], []>} : vector<8x256xbf16>, vector<256x384xbf16>, vector<8x384xf32> -> vector<8x384xf32>
    %49 = vector.broadcast %3 : vector<1x384xf32> to vector<8x384xf32>
    %50 = arith.addf %48, %49 : vector<8x384xf32>
    %cst_21 = arith.constant 0.000000e+00 : f32
    %51 = vector.broadcast %cst_21 : f32 to vector<8x384xf32>
    %52 = arith.maximumf %50, %51 : vector<8x384xf32>
    %53 = arith.truncf %52 : vector<8x384xf32> to vector<8x384xbf16>
    %c0_22 = arith.constant 0 : index
    %c0_23 = arith.constant 0 : index
    %54 = vector.load %arg5[%c0_22, %c0_23] : memref<512x128xbf16, #tpu.memory_space<vmem>>, vector<384x128xbf16>
    %cst_24 = arith.constant dense<0.000000e+00> : vector<8x128xf32>
    %55 = tpu.matmul %53, %54, %cst_24 {dimension_numbers = #tpu.dot_dimension_numbers<[1], [0], [0], [1], [0, 0, 1, 1], [], []>} : vector<8x384xbf16>, vector<384x128xbf16>, vector<8x128xf32> -> vector<8x128xf32>
    %56 = vector.broadcast %4 : vector<1x128xf32> to vector<8x128xf32>
    %57 = arith.addf %55, %56 : vector<8x128xf32>
    %cst_25 = arith.constant 0.000000e+00 : f32
    %58 = vector.broadcast %cst_25 : f32 to vector<8x128xf32>
    %59 = arith.maximumf %57, %58 : vector<8x128xf32>
    %60 = arith.truncf %59 : vector<8x128xf32> to vector<8x128xbf16>
    %c384 = arith.constant 384 : index
    %c0_26 = arith.constant 0 : index
    %61 = vector.load %arg5[%c384, %c0_26] : memref<512x128xbf16, #tpu.memory_space<vmem>>, vector<128x128xbf16>
    %cst_27 = arith.constant dense<0.000000e+00> : vector<8x128xf32>
    %62 = tpu.matmul %60, %61, %cst_27 {dimension_numbers = #tpu.dot_dimension_numbers<[1], [0], [0], [1], [0, 0, 1, 1], [], []>} : vector<8x128xbf16>, vector<128x128xbf16>, vector<8x128xf32> -> vector<8x128xf32>
    %63 = vector.broadcast %5 : vector<1x128xf32> to vector<8x128xf32>
    %64 = arith.addf %62, %63 : vector<8x128xf32>
    %65 = vector.extract_strided_slice %64 {offsets = [0, 0], sizes = [8, 8], strides = [1, 1]} : vector<8x128xf32> to vector<8x8xf32>
    %c0_28 = arith.constant 0 : index
    %c0_29 = arith.constant 0 : index
    %66 = vector.load %arg6[%c0_28, %c0_29] : memref<8x8xf32, #tpu.memory_space<vmem>>, vector<8x8xf32>
    tpu.vector_store %arg6[%c0_28, %c0_29], %65 {strides = array<i32>} : memref<8x8xf32, #tpu.memory_space<vmem>>, vector<8x8xf32>,
    return
  }
  func.func @transform_0(%arg0: i32) -> (i32, i32) {
    %c0_i32 = arith.constant 0 : i32
    %c0_i32_0 = arith.constant 0 : i32
    return %arg0, %c0_i32 : i32, i32
  }
  func.func @transform_1(%arg0: i32) -> (i32, i32) {
    %c0_i32 = arith.constant 0 : i32
    %c0_i32_0 = arith.constant 0 : i32
    %c0_i32_1 = arith.constant 0 : i32
    return %c0_i32, %c0_i32_0 : i32, i32
  }
  func.func @transform_2(%arg0: i32) -> (i32, i32) {
    %c0_i32 = arith.constant 0 : i32
    %c0_i32_0 = arith.constant 0 : i32
    %c0_i32_1 = arith.constant 0 : i32
    return %c0_i32, %c0_i32_0 : i32, i32
  }
  func.func @transform_3(%arg0: i32) -> (i32, i32) {
    %c0_i32 = arith.constant 0 : i32
    %c0_i32_0 = arith.constant 0 : i32
    %c0_i32_1 = arith.constant 0 : i32
    return %c0_i32, %c0_i32_0 : i32, i32
  }
  func.func @transform_4(%arg0: i32) -> (i32, i32) {
    %c0_i32 = arith.constant 0 : i32
    %c0_i32_0 = arith.constant 0 : i32
    %c0_i32_1 = arith.constant 0 : i32
    return %c0_i32, %c0_i32_0 : i32, i32
  }
  func.func @transform_5(%arg0: i32) -> (i32, i32) {
    %c0_i32 = arith.constant 0 : i32
    %c0_i32_0 = arith.constant 0 : i32
    return %arg0, %c0_i32 : i32, i32
  }
}

</mosaic_0001>

<llo_original>
// kernel: tpu_custom_call.1
$region0: #{tpu_custom_call.1}
  #allocation0 [shape = 'u32[]', space=smem, size = 0x4, offset = 0x4, fixed_abs, tag = 'smem constant byte address 0x4 - core index']
  #allocation1 [shape = 'u32[144,128]{1,0:T(1,128)}', space=vmem, size = 0x12000, scoped, tag = 'internal scratch']
  %s0 = inlined_call_operand.vmem [shape: f32[8,4], index: 0, kind: input, shape index: {}]
  %s1 = inlined_call_operand.hbm [shape: f32[16,384], index: 1, kind: input, shape index: {}]
  %s2 = inlined_call_operand.hbm [shape: bf16[512,256], index: 2, kind: input, shape index: {}]
  %s3 = inlined_call_operand.hbm [shape: bf16[256,384], index: 3, kind: input, shape index: {}]
  %s4 = inlined_call_operand.hbm [shape: bf16[512,128], index: 4, kind: input, shape index: {}]
  %s5 = inlined_call_operand.hbm [shape: f32[8,8], index: 5, kind: output, shape index: {}]
  %s6 = sld [smem:[#allocation0]]
  $region46: #{tpu_custom_call.1} parent=0
    _
  %s8 = ssub.s32 1, %s6
  %s9 = scalar_select 0, %s8, %s6
  $region1: #{tpu_custom_call.1} parent=0
    #allocation2 [shape = 'u8[24576]{0}', space=vmem, size = 0x6000, scoped, tag = 'input window, operand 1, single buffered']
    #allocation3 [shape = 's32[1]{0}', space=sflag, size = 0x4, scoped, tag = 'scoped memory for tpu_custom_call.1']
    #allocation4 [shape = 's32[1]{0}', space=sflag, size = 0x4, scoped, tag = 'scoped memory for tpu_custom_call.1']
    #allocation5 [shape = 'u8[262144]{0}', space=vmem, size = 0x40000, scoped, tag = 'input window, operand 2, single buffered']
    #allocation6 [shape = 's32[1]{0}', space=sflag, size = 0x4, scoped, tag = 'scoped memory for tpu_custom_call.1']
    #allocation7 [shape = 'u8[196608]{0}', space=vmem, size = 0x30000, scoped, tag = 'input window, operand 3, single buffered']
    #allocation8 [shape = 'u8[131072]{0}', space=vmem, size = 0x20000, scoped, tag = 'input window, operand 4, single buffered']
    #allocation9 [shape = 's32[1]{0}', space=sflag, size = 0x4, scoped, tag = 'scoped memory for tpu_custom_call.1']
    #allocation10 [shape = 'u8[4096]{0}', space=vmem, size = 0x1000, scoped, tag = 'output window, operand 0, single buffered']
    %10 = vsyncpa [#allocation3], 0
    %11 = vsyncpa [#allocation6], 0
    %12 = vsyncpa [#allocation9], 0
    %13 = vsyncpa [#allocation4], 0
    // Predicated region
    $region2: #{tpu_custom_call.1} parent=1 // pred_check
      _
    $region3: #{tpu_custom_call.1} parent=1 // pred_check_branch
      %15 = sbr.rel (0) target = $region5
    $region4: #{tpu_custom_call.1} parent=1 // pred_region
      _
    $region5: #{tpu_custom_call.1} parent=1 // pred_fallthru
      _
    // Predicated region
    $region6: #{tpu_custom_call.1} parent=1 // pred_check
      _
    $region7: #{tpu_custom_call.1} parent=1 // pred_check_branch
      %17 = sbr.rel (0) target = $region9
    $region8: #{tpu_custom_call.1} parent=1 // pred_region
      %s19 = ssub.s32 768, 768
      %20 = vsyncadd [#allocation3], %s19
      %s21 = sshll.u32 [#allocation2], 4
      %s22 = int_to_ptr.vmem [resolvable:$true] %s21
      %27 = dma.hbm_to_vmem [thread:$0]  %s1, 768, %s22, [#allocation3], 384, 384, 24
    $region9: #{tpu_custom_call.1} parent=1 // pred_fallthru
      _
    // Predicated region
    $region10: #{tpu_custom_call.1} parent=1 // pred_check
      _
    $region11: #{tpu_custom_call.1} parent=1 // pred_check_branch
      %29 = sbr.rel (0) target = $region13
    $region12: #{tpu_custom_call.1} parent=1 // pred_region
      %s31 = ssub.s32 8192, 8192
      %32 = vsyncadd [#allocation6], %s31
      %s33 = sshll.u32 [#allocation5], 4
      %s34 = int_to_ptr.vmem [resolvable:$true] %s33
      %39 = dma.hbm_to_vmem [thread:$0]  %s2, 8192, %s34, [#allocation6], 128, 128, 8
    $region13: #{tpu_custom_call.1} parent=1 // pred_fallthru
      _
    // Predicated region
    $region14: #{tpu_custom_call.1} parent=1 // pred_check
      _
    $region15: #{tpu_custom_call.1} parent=1 // pred_check_branch
      %41 = sbr.rel (0) target = $region17
    $region16: #{tpu_custom_call.1} parent=1 // pred_region
      %s43 = ssub.s32 6144, 6144
      %44 = vsyncadd [#allocation6], %s43
      %s45 = sshll.u32 [#allocation7], 4
      %s46 = int_to_ptr.vmem [resolvable:$true] %s45
      %51 = dma.hbm_to_vmem [thread:$0]  %s3, 6144, %s46, [#allocation6], 192, 192, 12
    $region17: #{tpu_custom_call.1} parent=1 // pred_fallthru
      _
    // Predicated region
    $region18: #{tpu_custom_call.1} parent=1 // pred_check
      _
    $region19: #{tpu_custom_call.1} parent=1 // pred_check_branch
      %53 = sbr.rel (0) target = $region21
    $region20: #{tpu_custom_call.1} parent=1 // pred_region
      %s55 = ssub.s32 4096, 4096
      %56 = vsyncadd [#allocation9], %s55
      %s57 = sshll.u32 [#allocation8], 4
      %s58 = int_to_ptr.vmem [resolvable:$true] %s57
      %63 = dma.hbm_to_vmem [thread:$0]  %s4, 4096, %s58, [#allocation9], 64, 64, 4
    $region21: #{tpu_custom_call.1} parent=1 // pred_fallthru
      _
    // Predicated region
    $region22: #{tpu_custom_call.1} parent=1 // pred_check
      _
    $region23: #{tpu_custom_call.1} parent=1 // pred_check_branch
      %65 = sbr.rel (0) target = $region25
    $region24: #{tpu_custom_call.1} parent=1 // pred_region
      %66 = dma.done [#allocation3], 768
    $region25: #{tpu_custom_call.1} parent=1 // pred_fallthru
      _
    // Predicated region
    $region26: #{tpu_custom_call.1} parent=1 // pred_check
      _
    $region27: #{tpu_custom_call.1} parent=1 // pred_check_branch
      %68 = sbr.rel (0) target = $region29
    $region28: #{tpu_custom_call.1} parent=1 // pred_region
      %69 = dma.done [#allocation6], 8192
    $region29: #{tpu_custom_call.1} parent=1 // pred_fallthru
      _
    // Predicated region
    $region30: #{tpu_custom_call.1} parent=1 // pred_check
      _
    $region31: #{tpu_custom_call.1} parent=1 // pred_check_branch
      %71 = sbr.rel (0) target = $region33
    $region32: #{tpu_custom_call.1} parent=1 // pred_region
      %72 = dma.done [#allocation6], 6144
    $region33: #{tpu_custom_call.1} parent=1 // pred_fallthru
      _
    // Predicated region
    $region34: #{tpu_custom_call.1} parent=1 // pred_check
      _
    $region35: #{tpu_custom_call.1} parent=1 // pred_check_branch
      %74 = sbr.rel (0) target = $region37
    $region36: #{tpu_custom_call.1} parent=1 // pred_region
      %75 = dma.done [#allocation9], 4096
    $region37: #{tpu_custom_call.1} parent=1 // pred_fallthru
      _
    %v77 = vld [vmem:[#allocation2] ss:$8 sm:$0x3]
    %s78 = scalar_lea.vmem [#allocation2], 1
    %v79 = vld [vmem:[%s78] ss:$8 sm:$0x3]
    %s80 = scalar_lea.vmem [#allocation2], 2
    %v81 = vld [vmem:[%s80] ss:$8 sm:$0x3]
    %s82 = scalar_lea.vmem [#allocation2], 3
    %v83 = vld [vmem:[%s82] ss:$8 sm:$0x7]
    %v84 = vld [vmem:[#allocation2 + $0x4] ss:$0 sm:$0xff]
    %v85 = vld [vmem:[#allocation2 + $0x5] ss:$0 sm:$0xff]
    %s86 = scalar_lea.vmem [#allocation2], 6
    %v87 = vld [vmem:[%s86] ss:$8 sm:$0x3]
    %s88 = scalar_lea.vmem [#allocation2], 7
    %v89 = vld [vmem:[%s88] ss:$8 sm:$0x3]
    %s90 = scalar_lea.vmem [#allocation2], 24
    %v91 = vld [vmem:[%s90] ss:$8 sm:$0x3]
    %s92 = scalar_lea.vmem [#allocation2], 25
    %v93 = vld [vmem:[%s92] ss:$8 sm:$0x3]
    %v94 = vld [vmem:[%s0] sm:$0xff]
    %96 = vset.pattern.permute.xlu0 0
    %97 = vperm.xlu0 %96, %v94
    %v98 = vpop.permute.xlu0 %97
    %v101 = vlaneseq
    %v102 = vshrl.u32 %v101, 7
    %v103 = vsub.s32 0, %v102
    %v104 = vrot.slane %v87, %v103
    %v105 = vlaneseq
    %v106 = vshrl.u32 %v105, 7
    %v107 = vsub.s32 1, %v106
    %v108 = vrot.slane %v87, %v107
    %v111 = vmul.f32 %v98, %v104
    %v112 = vmul.f32 %v98, %v108
    %113 = vset.pattern.permute.xlu0 1
    %114 = vperm.xlu0 %113, %v94
    %v115 = vpop.permute.xlu0 %114
    %v118 = vlaneseq
    %v119 = vshrl.u32 %v118, 7
    %v120 = vsub.s32 0, %v119
    %v121 = vrot.slane %v89, %v120
    %v122 = vlaneseq
    %v123 = vshrl.u32 %v122, 7
    %v124 = vsub.s32 1, %v123
    %v125 = vrot.slane %v89, %v124
    %v128 = vmul.f32 %v115, %v121
    %v129 = vmul.f32 %v115, %v125
    %v130 = vadd.f32 %v111, %v128
    %v131 = vadd.f32 %v112, %v129
    %132 = vset.pattern.permute.xlu0 2
    %133 = vperm.xlu0 %132, %v94
    %v134 = vpop.permute.xlu0 %133
    %v137 = vlaneseq
    %v138 = vshrl.u32 %v137, 7
    %v139 = vsub.s32 0, %v138
    %v140 = vrot.slane %v91, %v139
    %v141 = vlaneseq
    %v142 = vshrl.u32 %v141, 7
    %v143 = vsub.s32 1, %v142
    %v144 = vrot.slane %v91, %v143
    %v147 = vmul.f32 %v134, %v140
    %v148 = vmul.f32 %v134, %v144
    %v149 = vadd.f32 %v130, %v147
    %v150 = vadd.f32 %v131, %v148
    %151 = vset.pattern.permute.xlu0 3
    %152 = vperm.xlu0 %151, %v94
    %v153 = vpop.permute.xlu0 %152
    %v156 = vlaneseq
    %v157 = vshrl.u32 %v156, 7
    %v158 = vsub.s32 0, %v157
    %v159 = vrot.slane %v93, %v158
    %v160 = vlaneseq
    %v161 = vshrl.u32 %v160, 7
    %v162 = vsub.s32 1, %v161
    %v163 = vrot.slane %v93, %v162
    %v166 = vmul.f32 %v153, %v159
    %v167 = vmul.f32 %v153, %v163
    %v168 = vadd.f32 %v149, %v166
    %v169 = vadd.f32 %v150, %v167
    %v171 = vlaneseq
    %v172 = vshrl.u32 %v171, 7
    %v173 = vsub.s32 0, %v172
    %v174 = vrot.slane %v77, %v173
    %v175 = vlaneseq
    %v176 = vshrl.u32 %v175, 7
    %v177 = vsub.s32 1, %v176
    %v178 = vrot.slane %v77, %v177
    %v181 = vadd.f32 %v168, %v174
    %v182 = vadd.f32 %v169, %v178
    %v183 = vmax.f32 %v181, 0.0
    %v184 = vmax.f32 %v182, 0.0
    %v185 = vpack.c.bf16 %v183, %v183
    %v186 = vpack.c.bf16 %v184, %v184
    %v187 = vld [vmem:[#allocation5] sm:$0xff]
    %v188 = vld [vmem:[#allocation5 + $0x8] sm:$0xff]
    %v189 = vld [vmem:[#allocation5 + $0x10] sm:$0xff]
    %v190 = vld [vmem:[#allocation5 + $0x18] sm:$0xff]
    %v191 = vld [vmem:[#allocation5 + $0x20] sm:$0xff]
    %v192 = vld [vmem:[#allocation5 + $0x28] sm:$0xff]
    %v193 = vld [vmem:[#allocation5 + $0x30] sm:$0xff]
    %v194 = vld [vmem:[#allocation5 + $0x38] sm:$0xff]
    %v195 = vld [vmem:[#allocation5 + $0x40] sm:$0xff]
    %v196 = vld [vmem:[#allocation5 + $0x48] sm:$0xff]
    %v197 = vld [vmem:[#allocation5 + $0x50] sm:$0xff]
    %v198 = vld [vmem:[#allocation5 + $0x58] sm:$0xff]
    %v199 = vld [vmem:[#allocation5 + $0x60] sm:$0xff]
    %v200 = vld [vmem:[#allocation5 + $0x68] sm:$0xff]
    %v201 = vld [vmem:[#allocation5 + $0x70] sm:$0xff]
    %v202 = vld [vmem:[#allocation5 + $0x78] sm:$0xff]
    %v203 = vld [vmem:[#allocation5 + $0x80] sm:$0xff]
    %v204 = vld [vmem:[#allocation5 + $0x88] sm:$0xff]
    %v205 = vld [vmem:[#allocation5 + $0x90] sm:$0xff]
    %v206 = vld [vmem:[#allocation5 + $0x98] sm:$0xff]
    %v207 = vld [vmem:[#allocation5 + $0xa0] sm:$0xff]
    %v208 = vld [vmem:[#allocation5 + $0xa8] sm:$0xff]
    %v209 = vld [vmem:[#allocation5 + $0xb0] sm:$0xff]
    %v210 = vld [vmem:[#allocation5 + $0xb8] sm:$0xff]
    %v211 = vld [vmem:[#allocation5 + $0xc0] sm:$0xff]
    %v212 = vld [vmem:[#allocation5 + $0xc8] sm:$0xff]
    %v213 = vld [vmem:[#allocation5 + $0xd0] sm:$0xff]
    %v214 = vld [vmem:[#allocation5 + $0xd8] sm:$0xff]
    %v215 = vld [vmem:[#allocation5 + $0xe0] sm:$0xff]
    %v216 = vld [vmem:[#allocation5 + $0xe8] sm:$0xff]
    %v217 = vld [vmem:[#allocation5 + $0xf0] sm:$0xff]
    %v218 = vld [vmem:[#allocation5 + $0xf8] sm:$0xff]
    %v220 = vlaneseq
    %v221 = vshrl.u32 %v220, 7
    %v222 = vsub.s32 0, %v221
    %v223 = vrot.slane %v79, %v222
    %v224 = vlaneseq
    %v225 = vshrl.u32 %v224, 7
    %v226 = vsub.s32 1, %v225
    %v227 = vrot.slane %v79, %v226
    %v262 = vunpack.c.l.b16 %v187
    %v263 = vunpack.c.h.b16 %v187
    %v264 = vunpack.c.l.b16 %v188
    %v265 = vunpack.c.h.b16 %v188
    %v266 = vunpack.c.l.b16 %v189
    %v267 = vunpack.c.h.b16 %v189
    %v268 = vunpack.c.l.b16 %v190
    %v269 = vunpack.c.h.b16 %v190
    %v270 = vunpack.c.l.b16 %v191
    %v271 = vunpack.c.h.b16 %v191
    %v272 = vunpack.c.l.b16 %v192
    %v273 = vunpack.c.h.b16 %v192
    %v274 = vunpack.c.l.b16 %v193
    %v275 = vunpack.c.h.b16 %v193
    %v276 = vunpack.c.l.b16 %v194
    %v277 = vunpack.c.h.b16 %v194
    %v278 = vunpack.c.l.b16 %v195
    %v279 = vunpack.c.h.b16 %v195
    %v280 = vunpack.c.l.b16 %v196
    %v281 = vunpack.c.h.b16 %v196
    %v282 = vunpack.c.l.b16 %v197
    %v283 = vunpack.c.h.b16 %v197
    %v284 = vunpack.c.l.b16 %v198
    %v285 = vunpack.c.h.b16 %v198
    %v286 = vunpack.c.l.b16 %v199
    %v287 = vunpack.c.h.b16 %v199
    %v288 = vunpack.c.l.b16 %v200
    %v289 = vunpack.c.h.b16 %v200
    %v290 = vunpack.c.l.b16 %v201
    %v291 = vunpack.c.h.b16 %v201
    %v292 = vunpack.c.l.b16 %v202
    %v293 = vunpack.c.h.b16 %v202
    %v294 = vunpack.c.l.b16 %v203
    %v295 = vunpack.c.h.b16 %v203
    %v296 = vunpack.c.l.b16 %v204
    %v297 = vunpack.c.h.b16 %v204
    %v298 = vunpack.c.l.b16 %v205
    %v299 = vunpack.c.h.b16 %v205
    %v300 = vunpack.c.l.b16 %v206
    %v301 = vunpack.c.h.b16 %v206
    %v302 = vunpack.c.l.b16 %v207
    %v303 = vunpack.c.h.b16 %v207
    %v304 = vunpack.c.l.b16 %v208
    %v305 = vunpack.c.h.b16 %v208
    %v306 = vunpack.c.l.b16 %v209
    %v307 = vunpack.c.h.b16 %v209
    %v308 = vunpack.c.l.b16 %v210
    %v309 = vunpack.c.h.b16 %v210
    %v310 = vunpack.c.l.b16 %v211
    %v311 = vunpack.c.h.b16 %v211
    %v312 = vunpack.c.l.b16 %v212
    %v313 = vunpack.c.h.b16 %v212
    %v314 = vunpack.c.l.b16 %v213
    %v315 = vunpack.c.h.b16 %v213
    %v316 = vunpack.c.l.b16 %v214
    %v317 = vunpack.c.h.b16 %v214
    %v318 = vunpack.c.l.b16 %v215
    %v319 = vunpack.c.h.b16 %v215
    %v320 = vunpack.c.l.b16 %v216
    %v321 = vunpack.c.h.b16 %v216
    %v322 = vunpack.c.l.b16 %v217
    %v323 = vunpack.c.h.b16 %v217
    %v324 = vunpack.c.l.b16 %v218
    %v325 = vunpack.c.h.b16 %v218
    %v326 = vpack.c.b16 %v264, %v262
    %v327 = vpack.c.b16 %v265, %v263
    %v328 = vpack.c.b16 %v268, %v266
    %v329 = vpack.c.b16 %v269, %v267
    %v330 = vpack.c.b16 %v272, %v270
    %v331 = vpack.c.b16 %v273, %v271
    %v332 = vpack.c.b16 %v276, %v274
    %v333 = vpack.c.b16 %v277, %v275
    %v334 = vpack.c.b16 %v280, %v278
    %v335 = vpack.c.b16 %v281, %v279
    %v336 = vpack.c.b16 %v284, %v282
    %v337 = vpack.c.b16 %v285, %v283
    %v338 = vpack.c.b16 %v288, %v286
    %v339 = vpack.c.b16 %v289, %v287
    %v340 = vpack.c.b16 %v292, %v290
    %v341 = vpack.c.b16 %v293, %v291
    %v342 = vpack.c.b16 %v296, %v294
    %v343 = vpack.c.b16 %v297, %v295
    %v344 = vpack.c.b16 %v300, %v298
    %v345 = vpack.c.b16 %v301, %v299
    %v346 = vpack.c.b16 %v304, %v302
    %v347 = vpack.c.b16 %v305, %v303
    %v348 = vpack.c.b16 %v308, %v306
    %v349 = vpack.c.b16 %v309, %v307
    %v350 = vpack.c.b16 %v312, %v310
    %v351 = vpack.c.b16 %v313, %v311
    %v352 = vpack.c.b16 %v316, %v314
    %v353 = vpack.c.b16 %v317, %v315
    %v354 = vpack.c.b16 %v320, %v318
    %v355 = vpack.c.b16 %v321, %v319
    %v356 = vpack.c.b16 %v324, %v322
    %v357 = vpack.c.b16 %v325, %v323
    %390 = vmatprep.subr.bf16.mxu0 %v327
    %391 = vmatpush1.bf16.msra.mxu0 %v326
    %392 = vmatprep.subr.bf16.mxu0 %v329
    %393 = vmatpush1.bf16.msra.mxu0 %v328
    %394 = vmatprep.subr.bf16.mxu0 %v331
    %395 = vmatpush1.bf16.msra.mxu0 %v330
    %396 = vmatprep.subr.bf16.mxu0 %v333
    %397 = vmatpush1.bf16.msra.mxu0 %v332
    %398 = vmatprep.subr.bf16.mxu0 %v335
    %399 = vmatpush1.bf16.msra.mxu0 %v334
    %400 = vmatprep.subr.bf16.mxu0 %v337
    %401 = vmatpush1.bf16.msra.mxu0 %v336
    %402 = vmatprep.subr.bf16.mxu0 %v339
    %403 = vmatpush1.bf16.msra.mxu0 %v338
    %404 = vmatprep.subr.bf16.mxu0 %v341
    %405 = vmatpush1.bf16.msra.mxu0 %v340
    %406 = vmatprep.subr.bf16.mxu0 %v343
    %407 = vmatpush1.bf16.msra.mxu0 %v342
    %408 = vmatprep.subr.bf16.mxu0 %v345
    %409 = vmatpush1.bf16.msra.mxu0 %v344
    %410 = vmatprep.subr.bf16.mxu0 %v347
    %411 = vmatpush1.bf16.msra.mxu0 %v346
    %412 = vmatprep.subr.bf16.mxu0 %v349
    %413 = vmatpush1.bf16.msra.mxu0 %v348
    %414 = vmatprep.subr.bf16.mxu0 %v351
    %415 = vmatpush1.bf16.msra.mxu0 %v350
    %416 = vmatprep.subr.bf16.mxu0 %v353
    %417 = vmatpush1.bf16.msra.mxu0 %v352
    %418 = vmatprep.subr.bf16.mxu0 %v355
    %419 = vmatpush1.bf16.msra.mxu0 %v354
    %420 = vmatprep.subr.bf16.mxu0 %v357
    %421 = vmatpush1.bf16.msra.mxu0 %v356
    %422 = vmatprep.mubr.bf16.mxu0 %v186
    %423 = vmatmul.mubr.bf16.gmra.mrb[0].mxu0 %v185
    %v424 = vpop.f32.mrb[0].mxu0
    %v425 = vadd.f32 %v223, %v424
    %v426 = vpop.f32.mrb[0].mxu0
    %v427 = vadd.f32 %v227, %v426
    %v428 = vpop.f32.mrb[0].mxu0
    %v429 = vpop.f32.mrb[0].mxu0
    %430 = vdwg.mxu0
    %v431 = vpack.c.bf16 %v425, %v425
    %v432 = vpack.c.bf16 %v427, %v427
    %v433 = vld [vmem:[#allocation5 + $0x100] sm:$0xff]
    %v434 = vld [vmem:[#allocation5 + $0x108] sm:$0xff]
    %v435 = vld [vmem:[#allocation5 + $0x110] sm:$0xff]
    %v436 = vld [vmem:[#allocation5 + $0x118] sm:$0xff]
    %v437 = vld [vmem:[#allocation5 + $0x120] sm:$0xff]
    %v438 = vld [vmem:[#allocation5 + $0x128] sm:$0xff]
    %v439 = vld [vmem:[#allocation5 + $0x130] sm:$0xff]
    %v440 = vld [vmem:[#allocation5 + $0x138] sm:$0xff]
    %v441 = vld [vmem:[#allocation5 + $0x140] sm:$0xff]
    %v442 = vld [vmem:[#allocation5 + $0x148] sm:$0xff]
    %v443 = vld [vmem:[#allocation5 + $0x150] sm:$0xff]
    %v444 = vld [vmem:[#allocation5 + $0x158] sm:$0xff]
    %v445 = vld [vmem:[#allocation5 + $0x160] sm:$0xff]
    %v446 = vld [vmem:[#allocation5 + $0x168] sm:$0xff]
    %v447 = vld [vmem:[#allocation5 + $0x170] sm:$0xff]
    %v448 = vld [vmem:[#allocation5 + $0x178] sm:$0xff]
    %v449 = vld [vmem:[#allocation5 + $0x180] sm:$0xff]
    %v450 = vld [vmem:[#allocation5 + $0x188] sm:$0xff]
    %v451 = vld [vmem:[#allocation5 + $0x190] sm:$0xff]
    %v452 = vld [vmem:[#allocation5 + $0x198] sm:$0xff]
    %v453 = vld [vmem:[#allocation5 + $0x1a0] sm:$0xff]
    %v454 = vld [vmem:[#allocation5 + $0x1a8] sm:$0xff]
    %v455 = vld [vmem:[#allocation5 + $0x1b0] sm:$0xff]
    %v456 = vld [vmem:[#allocation5 + $0x1b8] sm:$0xff]
    %v457 = vld [vmem:[#allocation5 + $0x1c0] sm:$0xff]
    %v458 = vld [vmem:[#allocation5 + $0x1c8] sm:$0xff]
    %v459 = vld [vmem:[#allocation5 + $0x1d0] sm:$0xff]
    %v460 = vld [vmem:[#allocation5 + $0x1d8] sm:$0xff]
    %v461 = vld [vmem:[#allocation5 + $0x1e0] sm:$0xff]
    %v462 = vld [vmem:[#allocation5 + $0x1e8] sm:$0xff]
    %v463 = vld [vmem:[#allocation5 + $0x1f0] sm:$0xff]
    %v464 = vld [vmem:[#allocation5 + $0x1f8] sm:$0xff]
    %v466 = vlaneseq
    %v467 = vshrl.u32 %v466, 7
    %v468 = vsub.s32 0, %v467
    %v469 = vrot.slane %v81, %v468
    %v470 = vlaneseq
    %v471 = vshrl.u32 %v470, 7
    %v472 = vsub.s32 1, %v471
    %v473 = vrot.slane %v81, %v472
    %v508 = vunpack.c.l.b16 %v433
    %v509 = vunpack.c.h.b16 %v433
    %v510 = vunpack.c.l.b16 %v434
    %v511 = vunpack.c.h.b16 %v434
    %v512 = vunpack.c.l.b16 %v435
    %v513 = vunpack.c.h.b16 %v435
    %v514 = vunpack.c.l.b16 %v436
    %v515 = vunpack.c.h.b16 %v436
    %v516 = vunpack.c.l.b16 %v437
    %v517 = vunpack.c.h.b16 %v437
    %v518 = vunpack.c.l.b16 %v438
    %v519 = vunpack.c.h.b16 %v438
    %v520 = vunpack.c.l.b16 %v439
    %v521 = vunpack.c.h.b16 %v439
    %v522 = vunpack.c.l.b16 %v440
    %v523 = vunpack.c.h.b16 %v440
    %v524 = vunpack.c.l.b16 %v441
    %v525 = vunpack.c.h.b16 %v441
    %v526 = vunpack.c.l.b16 %v442
    %v527 = vunpack.c.h.b16 %v442
    %v528 = vunpack.c.l.b16 %v443
    %v529 = vunpack.c.h.b16 %v443
    %v530 = vunpack.c.l.b16 %v444
    %v531 = vunpack.c.h.b16 %v444
    %v532 = vunpack.c.l.b16 %v445
    %v533 = vunpack.c.h.b16 %v445
    %v534 = vunpack.c.l.b16 %v446
    %v535 = vunpack.c.h.b16 %v446
    %v536 = vunpack.c.l.b16 %v447
    %v537 = vunpack.c.h.b16 %v447
    %v538 = vunpack.c.l.b16 %v448
    %v539 = vunpack.c.h.b16 %v448
    %v540 = vunpack.c.l.b16 %v449
    %v541 = vunpack.c.h.b16 %v449
    %v542 = vunpack.c.l.b16 %v450
    %v543 = vunpack.c.h.b16 %v450
    %v544 = vunpack.c.l.b16 %v451
    %v545 = vunpack.c.h.b16 %v451
    %v546 = vunpack.c.l.b16 %v452
    %v547 = vunpack.c.h.b16 %v452
    %v548 = vunpack.c.l.b16 %v453
    %v549 = vunpack.c.h.b16 %v453
    %v550 = vunpack.c.l.b16 %v454
    %v551 = vunpack.c.h.b16 %v454
    %v552 = vunpack.c.l.b16 %v455
    %v553 = vunpack.c.h.b16 %v455
    %v554 = vunpack.c.l.b16 %v456
    %v555 = vunpack.c.h.b16 %v456
    %v556 = vunpack.c.l.b16 %v457
    %v557 = vunpack.c.h.b16 %v457
    %v558 = vunpack.c.l.b16 %v458
    %v559 = vunpack.c.h.b16 %v458
    %v560 = vunpack.c.l.b16 %v459
    %v561 = vunpack.c.h.b16 %v459
    %v562 = vunpack.c.l.b16 %v460
    %v563 = vunpack.c.h.b16 %v460
    %v564 = vunpack.c.l.b16 %v461
    %v565 = vunpack.c.h.b16 %v461
    %v566 = vunpack.c.l.b16 %v462
    %v567 = vunpack.c.h.b16 %v462
    %v568 = vunpack.c.l.b16 %v463
    %v569 = vunpack.c.h.b16 %v463
    %v570 = vunpack.c.l.b16 %v464
    %v571 = vunpack.c.h.b16 %v464
    %v572 = vpack.c.b16 %v510, %v508
    %v573 = vpack.c.b16 %v511, %v509
    %v574 = vpack.c.b16 %v514, %v512
    %v575 = vpack.c.b16 %v515, %v513
    %v576 = vpack.c.b16 %v518, %v516
    %v577 = vpack.c.b16 %v519, %v517
    %v578 = vpack.c.b16 %v522, %v520
    %v579 = vpack.c.b16 %v523, %v521
    %v580 = vpack.c.b16 %v526, %v524
    %v581 = vpack.c.b16 %v527, %v525
    %v582 = vpack.c.b16 %v530, %v528
    %v583 = vpack.c.b16 %v531, %v529
    %v584 = vpack.c.b16 %v534, %v532
    %v585 = vpack.c.b16 %v535, %v533
    %v586 = vpack.c.b16 %v538, %v536
    %v587 = vpack.c.b16 %v539, %v537
    %v588 = vpack.c.b16 %v542, %v540
    %v589 = vpack.c.b16 %v543, %v541
    %v590 = vpack.c.b16 %v546, %v544
    %v591 = vpack.c.b16 %v547, %v545
    %v592 = vpack.c.b16 %v550, %v548
    %v593 = vpack.c.b16 %v551, %v549
    %v594 = vpack.c.b16 %v554, %v552
    %v595 = vpack.c.b16 %v555, %v553
    %v596 = vpack.c.b16 %v558, %v556
    %v597 = vpack.c.b16 %v559, %v557
    %v598 = vpack.c.b16 %v562, %v560
    %v599 = vpack.c.b16 %v563, %v561
    %v600 = vpack.c.b16 %v566, %v564
    %v601 = vpack.c.b16 %v567, %v565
    %v602 = vpack.c.b16 %v570, %v568
    %v603 = vpack.c.b16 %v571, %v569
    %636 = vmatprep.subr.bf16.mxu0 %v573
    %637 = vmatpush1.bf16.msra.mxu0 %v572
    %638 = vmatprep.subr.bf16.mxu0 %v575
    %639 = vmatpush1.bf16.msra.mxu0 %v574
    %640 = vmatprep.subr.bf16.mxu0 %v577
    %641 = vmatpush1.bf16.msra.mxu0 %v576
    %642 = vmatprep.subr.bf16.mxu0 %v579
    %643 = vmatpush1.bf16.msra.mxu0 %v578
    %644 = vmatprep.subr.bf16.mxu0 %v581
    %645 = vmatpush1.bf16.msra.mxu0 %v580
    %646 = vmatprep.subr.bf16.mxu0 %v583
    %647 = vmatpush1.bf16.msra.mxu0 %v582
    %648 = vmatprep.subr.bf16.mxu0 %v585
    %649 = vmatpush1.bf16.msra.mxu0 %v584
    %650 = vmatprep.subr.bf16.mxu0 %v587
    %651 = vmatpush1.bf16.msra.mxu0 %v586
    %652 = vmatprep.subr.bf16.mxu0 %v589
    %653 = vmatpush1.bf16.msra.mxu0 %v588
    %654 = vmatprep.subr.bf16.mxu0 %v591
    %655 = vmatpush1.bf16.msra.mxu0 %v590
    %656 = vmatprep.subr.bf16.mxu0 %v593
    %657 = vmatpush1.bf16.msra.mxu0 %v592
    %658 = vmatprep.subr.bf16.mxu0 %v595
    %659 = vmatpush1.bf16.msra.mxu0 %v594
    %660 = vmatprep.subr.bf16.mxu0 %v597
    %661 = vmatpush1.bf16.msra.mxu0 %v596
    %662 = vmatprep.subr.bf16.mxu0 %v599
    %663 = vmatpush1.bf16.msra.mxu0 %v598
    %664 = vmatprep.subr.bf16.mxu0 %v601
    %665 = vmatpush1.bf16.msra.mxu0 %v600
    %666 = vmatprep.subr.bf16.mxu0 %v603
    %667 = vmatpush1.bf16.msra.mxu0 %v602
    %668 = vmatprep.mubr.bf16.mxu0 %v432
    %669 = vmatmul.mubr.bf16.gmra.mrb[0].mxu0 %v431
    %v670 = vpop.f32.mrb[0].mxu0
    %v671 = vadd.f32 %v469, %v670
    %v672 = vpop.f32.mrb[0].mxu0
    %v673 = vadd.f32 %v473, %v672
    %v674 = vpop.f32.mrb[0].mxu0
    %v675 = vpop.f32.mrb[0].mxu0
    %676 = vdwg.mxu0
    %v677 = vmax.f32 %v671, 0.0
    %v678 = vmax.f32 %v673, 0.0
    %v679 = vpack.c.bf16 %v677, %v677
    %v680 = vpack.c.bf16 %v678, %v678
    %v681 = vld [vmem:[#allocation7] sm:$0xff]
    %v682 = vld [vmem:[#allocation7 + $0x8] sm:$0xf]
    %v683 = vld [vmem:[#allocation7 + $0xc] sm:$0xff]
    %v684 = vld [vmem:[#allocation7 + $0x14] sm:$0xf]
    %v685 = vld [vmem:[#allocation7 + $0x18] sm:$0xff]
    %v686 = vld [vmem:[#allocation7 + $0x20] sm:$0xf]
    %v687 = vld [vmem:[#allocation7 + $0x24] sm:$0xff]
    %v688 = vld [vmem:[#allocation7 + $0x2c] sm:$0xf]
    %v689 = vld [vmem:[#allocation7 + $0x30] sm:$0xff]
    %v690 = vld [vmem:[#allocation7 + $0x38] sm:$0xf]
    %v691 = vld [vmem:[#allocation7 + $0x3c] sm:$0xff]
    %v692 = vld [vmem:[#allocation7 + $0x44] sm:$0xf]
    %v693 = vld [vmem:[#allocation7 + $0x48] sm:$0xff]
    %v694 = vld [vmem:[#allocation7 + $0x50] sm:$0xf]
    %v695 = vld [vmem:[#allocation7 + $0x54] sm:$0xff]
    %v696 = vld [vmem:[#allocation7 + $0x5c] sm:$0xf]
    %v697 = vld [vmem:[#allocation7 + $0x60] sm:$0xff]
    %v698 = vld [vmem:[#allocation7 + $0x68] sm:$0xf]
    %v699 = vld [vmem:[#allocation7 + $0x6c] sm:$0xff]
    %v700 = vld [vmem:[#allocation7 + $0x74] sm:$0xf]
    %v701 = vld [vmem:[#allocation7 + $0x78] sm:$0xff]
    %v702 = vld [vmem:[#allocation7 + $0x80] sm:$0xf]
    %v703 = vld [vmem:[#allocation7 + $0x84] sm:$0xff]
    %v704 = vld [vmem:[#allocation7 + $0x8c] sm:$0xf]
    %v705 = vld [vmem:[#allocation7 + $0x90] sm:$0xff]
    %v706 = vld [vmem:[#allocation7 + $0x98] sm:$0xf]
    %v707 = vld [vmem:[#allocation7 + $0x9c] sm:$0xff]
    %v708 = vld [vmem:[#allocation7 + $0xa4] sm:$0xf]
    %v709 = vld [vmem:[#allocation7 + $0xa8] sm:$0xff]
    %v710 = vld [vmem:[#allocation7 + $0xb0] sm:$0xf]
    %v711 = vld [vmem:[#allocation7 + $0xb4] sm:$0xff]
    %v712 = vld [vmem:[#allocation7 + $0xbc] sm:$0xf]
    %v713 = vld [vmem:[#allocation7 + $0xc0] sm:$0xff]
    %v714 = vld [vmem:[#allocation7 + $0xc8] sm:$0xf]
    %v715 = vld [vmem:[#allocation7 + $0xcc] sm:$0xff]
    %v716 = vld [vmem:[#allocation7 + $0xd4] sm:$0xf]
    %v717 = vld [vmem:[#allocation7 + $0xd8] sm:$0xff]
    %v718 = vld [vmem:[#allocation7 + $0xe0] sm:$0xf]
    %v719 = vld [vmem:[#allocation7 + $0xe4] sm:$0xff]
    %v720 = vld [vmem:[#allocation7 + $0xec] sm:$0xf]
    %v721 = vld [vmem:[#allocation7 + $0xf0] sm:$0xff]
    %v722 = vld [vmem:[#allocation7 + $0xf8] sm:$0xf]
    %v723 = vld [vmem:[#allocation7 + $0xfc] sm:$0xff]
    %v724 = vld [vmem:[#allocation7 + $0x104] sm:$0xf]
    %v725 = vld [vmem:[#allocation7 + $0x108] sm:$0xff]
    %v726 = vld [vmem:[#allocation7 + $0x110] sm:$0xf]
    %v727 = vld [vmem:[#allocation7 + $0x114] sm:$0xff]
    %v728 = vld [vmem:[#allocation7 + $0x11c] sm:$0xf]
    %v729 = vld [vmem:[#allocation7 + $0x120] sm:$0xff]
    %v730 = vld [vmem:[#allocation7 + $0x128] sm:$0xf]
    %v731 = vld [vmem:[#allocation7 + $0x12c] sm:$0xff]
    %v732 = vld [vmem:[#allocation7 + $0x134] sm:$0xf]
    %v733 = vld [vmem:[#allocation7 + $0x138] sm:$0xff]
    %v734 = vld [vmem:[#allocation7 + $0x140] sm:$0xf]
    %v735 = vld [vmem:[#allocation7 + $0x144] sm:$0xff]
    %v736 = vld [vmem:[#allocation7 + $0x14c] sm:$0xf]
    %v737 = vld [vmem:[#allocation7 + $0x150] sm:$0xff]
    %v738 = vld [vmem:[#allocation7 + $0x158] sm:$0xf]
    %v739 = vld [vmem:[#allocation7 + $0x15c] sm:$0xff]
    %v740 = vld [vmem:[#allocation7 + $0x164] sm:$0xf]
    %v741 = vld [vmem:[#allocation7 + $0x168] sm:$0xff]
    %v742 = vld [vmem:[#allocation7 + $0x170] sm:$0xf]
    %v743 = vld [vmem:[#allocation7 + $0x174] sm:$0xff]
    %v744 = vld [vmem:[#allocation7 + $0x17c] sm:$0xf]
    %v746 = vlaneseq
    %v747 = vshrl.u32 %v746, 7
    %v748 = vsub.s32 0, %v747
    %v749 = vrot.slane %v83, %v748
    %v750 = vlaneseq
    %v751 = vshrl.u32 %v750, 7
    %v752 = vsub.s32 1, %v751
    %v753 = vrot.slane %v83, %v752
    %v754 = vlaneseq
    %v755 = vshrl.u32 %v754, 7
    %v756 = vsub.s32 2, %v755
    %v757 = vrot.slane %v83, %v756
    %v825 = vunpack.c.l.b16 %v681
    %v826 = vunpack.c.h.b16 %v681
    %v827 = vunpack.c.l.b16 %v682
    %v828 = vunpack.c.l.b16 %v683
    %v829 = vunpack.c.h.b16 %v683
    %v830 = vunpack.c.l.b16 %v684
    %v831 = vunpack.c.l.b16 %v685
    %v832 = vunpack.c.h.b16 %v685
    %v833 = vunpack.c.l.b16 %v686
    %v834 = vunpack.c.l.b16 %v687
    %v835 = vunpack.c.h.b16 %v687
    %v836 = vunpack.c.l.b16 %v688
    %v837 = vunpack.c.l.b16 %v689
    %v838 = vunpack.c.h.b16 %v689
    %v839 = vunpack.c.l.b16 %v690
    %v840 = vunpack.c.l.b16 %v691
    %v841 = vunpack.c.h.b16 %v691
    %v842 = vunpack.c.l.b16 %v692
    %v843 = vunpack.c.l.b16 %v693
    %v844 = vunpack.c.h.b16 %v693
    %v845 = vunpack.c.l.b16 %v694
    %v846 = vunpack.c.l.b16 %v695
    %v847 = vunpack.c.h.b16 %v695
    %v848 = vunpack.c.l.b16 %v696
    %v849 = vunpack.c.l.b16 %v697
    %v850 = vunpack.c.h.b16 %v697
    %v851 = vunpack.c.l.b16 %v698
    %v852 = vunpack.c.l.b16 %v699
    %v853 = vunpack.c.h.b16 %v699
    %v854 = vunpack.c.l.b16 %v700
    %v855 = vunpack.c.l.b16 %v701
    %v856 = vunpack.c.h.b16 %v701
    %v857 = vunpack.c.l.b16 %v702
    %v858 = vunpack.c.l.b16 %v703
    %v859 = vunpack.c.h.b16 %v703
    %v860 = vunpack.c.l.b16 %v704
    %v861 = vunpack.c.l.b16 %v705
    %v862 = vunpack.c.h.b16 %v705
    %v863 = vunpack.c.l.b16 %v706
    %v864 = vunpack.c.l.b16 %v707
    %v865 = vunpack.c.h.b16 %v707
    %v866 = vunpack.c.l.b16 %v708
    %v867 = vunpack.c.l.b16 %v709
    %v868 = vunpack.c.h.b16 %v709
    %v869 = vunpack.c.l.b16 %v710
    %v870 = vunpack.c.l.b16 %v711
    %v871 = vunpack.c.h.b16 %v711
    %v872 = vunpack.c.l.b16 %v712
    %v873 = vunpack.c.l.b16 %v713
    %v874 = vunpack.c.h.b16 %v713
    %v875 = vunpack.c.l.b16 %v714
    %v876 = vunpack.c.l.b16 %v715
    %v877 = vunpack.c.h.b16 %v715
    %v878 = vunpack.c.l.b16 %v716
    %v879 = vunpack.c.l.b16 %v717
    %v880 = vunpack.c.h.b16 %v717
    %v881 = vunpack.c.l.b16 %v718
    %v882 = vunpack.c.l.b16 %v719
    %v883 = vunpack.c.h.b16 %v719
    %v884 = vunpack.c.l.b16 %v720
    %v885 = vunpack.c.l.b16 %v721
    %v886 = vunpack.c.h.b16 %v721
    %v887 = vunpack.c.l.b16 %v722
    %v888 = vunpack.c.l.b16 %v723
    %v889 = vunpack.c.h.b16 %v723
    %v890 = vunpack.c.l.b16 %v724
    %v891 = vunpack.c.l.b16 %v725
    %v892 = vunpack.c.h.b16 %v725
    %v893 = vunpack.c.l.b16 %v726
    %v894 = vunpack.c.l.b16 %v727
    %v895 = vunpack.c.h.b16 %v727
    %v896 = vunpack.c.l.b16 %v728
    %v897 = vunpack.c.l.b16 %v729
    %v898 = vunpack.c.h.b16 %v729
    %v899 = vunpack.c.l.b16 %v730
    %v900 = vunpack.c.l.b16 %v731
    %v901 = vunpack.c.h.b16 %v731
    %v902 = vunpack.c.l.b16 %v732
    %v903 = vunpack.c.l.b16 %v733
    %v904 = vunpack.c.h.b16 %v733
    %v905 = vunpack.c.l.b16 %v734
    %v906 = vunpack.c.l.b16 %v735
    %v907 = vunpack.c.h.b16 %v735
    %v908 = vunpack.c.l.b16 %v736
    %v909 = vunpack.c.l.b16 %v737
    %v910 = vunpack.c.h.b16 %v737
    %v911 = vunpack.c.l.b16 %v738
    %v912 = vunpack.c.l.b16 %v739
    %v913 = vunpack.c.h.b16 %v739
    %v914 = vunpack.c.l.b16 %v740
    %v915 = vunpack.c.l.b16 %v741
    %v916 = vunpack.c.h.b16 %v741
    %v917 = vunpack.c.l.b16 %v742
    %v918 = vunpack.c.l.b16 %v743
    %v919 = vunpack.c.h.b16 %v743
    %v920 = vunpack.c.l.b16 %v744
    %v921 = vpack.c.b16 %v828, %v825
    %v922 = vpack.c.b16 %v829, %v826
    %v923 = vpack.c.b16 %v830, %v827
    %v924 = vpack.c.b16 %v834, %v831
    %v925 = vpack.c.b16 %v835, %v832
    %v926 = vpack.c.b16 %v836, %v833
    %v927 = vpack.c.b16 %v840, %v837
    %v928 = vpack.c.b16 %v841, %v838
    %v929 = vpack.c.b16 %v842, %v839
    %v930 = vpack.c.b16 %v846, %v843
    %v931 = vpack.c.b16 %v847, %v844
    %v932 = vpack.c.b16 %v848, %v845
    %v933 = vpack.c.b16 %v852, %v849
    %v934 = vpack.c.b16 %v853, %v850
    %v935 = vpack.c.b16 %v854, %v851
    %v936 = vpack.c.b16 %v858, %v855
    %v937 = vpack.c.b16 %v859, %v856
    %v938 = vpack.c.b16 %v860, %v857
    %v939 = vpack.c.b16 %v864, %v861
    %v940 = vpack.c.b16 %v865, %v862
    %v941 = vpack.c.b16 %v866, %v863
    %v942 = vpack.c.b16 %v870, %v867
    %v943 = vpack.c.b16 %v871, %v868
    %v944 = vpack.c.b16 %v872, %v869
    %v945 = vpack.c.b16 %v876, %v873
    %v946 = vpack.c.b16 %v877, %v874
    %v947 = vpack.c.b16 %v878, %v875
    %v948 = vpack.c.b16 %v882, %v879
    %v949 = vpack.c.b16 %v883, %v880
    %v950 = vpack.c.b16 %v884, %v881
    %v951 = vpack.c.b16 %v888, %v885
    %v952 = vpack.c.b16 %v889, %v886
    %v953 = vpack.c.b16 %v890, %v887
    %v954 = vpack.c.b16 %v894, %v891
    %v955 = vpack.c.b16 %v895, %v892
    %v956 = vpack.c.b16 %v896, %v893
    %v957 = vpack.c.b16 %v900, %v897
    %v958 = vpack.c.b16 %v901, %v898
    %v959 = vpack.c.b16 %v902, %v899
    %v960 = vpack.c.b16 %v906, %v903
    %v961 = vpack.c.b16 %v907, %v904
    %v962 = vpack.c.b16 %v908, %v905
    %v963 = vpack.c.b16 %v912, %v909
    %v964 = vpack.c.b16 %v913, %v910
    %v965 = vpack.c.b16 %v914, %v911
    %v966 = vpack.c.b16 %v918, %v915
    %v967 = vpack.c.b16 %v919, %v916
    %v968 = vpack.c.b16 %v920, %v917
    %1017 = vmatprep.subr.bf16.mxu0 %v922
    %1018 = vmatpush1.bf16.msra.mxu0 %v921
    %1019 = vmatprep.subr.bf16.mxu0 %v925
    %1020 = vmatpush1.bf16.msra.mxu0 %v924
    %1021 = vmatprep.subr.bf16.mxu0 %v928
    %1022 = vmatpush1.bf16.msra.mxu0 %v927
    %1023 = vmatprep.subr.bf16.mxu0 %v931
    %1024 = vmatpush1.bf16.msra.mxu0 %v930
    %1025 = vmatprep.subr.bf16.mxu0 %v934
    %1026 = vmatpush1.bf16.msra.mxu0 %v933
    %1027 = vmatprep.subr.bf16.mxu0 %v937
    %1028 = vmatpush1.bf16.msra.mxu0 %v936
    %1029 = vmatprep.subr.bf16.mxu0 %v940
    %1030 = vmatpush1.bf16.msra.mxu0 %v939
    %1031 = vmatprep.subr.bf16.mxu0 %v943
    %1032 = vmatpush1.bf16.msra.mxu0 %v942
    %1033 = vmatprep.subr.bf16.mxu0 %v946
    %1034 = vmatpush1.bf16.msra.mxu0 %v945
    %1035 = vmatprep.subr.bf16.mxu0 %v949
    %1036 = vmatpush1.bf16.msra.mxu0 %v948
    %1037 = vmatprep.subr.bf16.mxu0 %v952
    %1038 = vmatpush1.bf16.msra.mxu0 %v951
    %1039 = vmatprep.subr.bf16.mxu0 %v955
    %1040 = vmatpush1.bf16.msra.mxu0 %v954
    %1041 = vmatprep.subr.bf16.mxu0 %v958
    %1042 = vmatpush1.bf16.msra.mxu0 %v957
    %1043 = vmatprep.subr.bf16.mxu0 %v961
    %1044 = vmatpush1.bf16.msra.mxu0 %v960
    %1045 = vmatprep.subr.bf16.mxu0 %v964
    %1046 = vmatpush1.bf16.msra.mxu0 %v963
    %1047 = vmatprep.subr.bf16.mxu0 %v967
    %1048 = vmatpush1.bf16.msra.mxu0 %v966
    %1049 = vmatprep.mubr.bf16.mxu0 %v680
    %1050 = vmatmul.mubr.bf16.gmra.mrb[0].mxu0 %v679
    %v1051 = vpop.f32.mrb[0].mxu0
    %v1052 = vadd.f32 %v749, %v1051
    %v1053 = vpop.f32.mrb[0].mxu0
    %v1054 = vadd.f32 %v753, %v1053
    %v1055 = vpop.f32.mrb[0].mxu0
    %v1056 = vpop.f32.mrb[0].mxu0
    %1057 = vdwg.mxu0
    %1058 = vmatprep.subr.bf16.mxu0 0
    %1059 = vmatpush1.bf16.msra.mxu0 %v923
    %1060 = vmatprep.subr.bf16.mxu0 0
    %1061 = vmatpush1.bf16.msra.mxu0 %v926
    %1062 = vmatprep.subr.bf16.mxu0 0
    %1063 = vmatpush1.bf16.msra.mxu0 %v929
    %1064 = vmatprep.subr.bf16.mxu0 0
    %1065 = vmatpush1.bf16.msra.mxu0 %v932
    %1066 = vmatprep.subr.bf16.mxu0 0
    %1067 = vmatpush1.bf16.msra.mxu0 %v935
    %1068 = vmatprep.subr.bf16.mxu0 0
    %1069 = vmatpush1.bf16.msra.mxu0 %v938
    %1070 = vmatprep.subr.bf16.mxu0 0
    %1071 = vmatpush1.bf16.msra.mxu0 %v941
    %1072 = vmatprep.subr.bf16.mxu0 0
    %1073 = vmatpush1.bf16.msra.mxu0 %v944
    %1074 = vmatprep.subr.bf16.mxu0 0
    %1075 = vmatpush1.bf16.msra.mxu0 %v947
    %1076 = vmatprep.subr.bf16.mxu0 0
    %1077 = vmatpush1.bf16.msra.mxu0 %v950
    %1078 = vmatprep.subr.bf16.mxu0 0
    %1079 = vmatpush1.bf16.msra.mxu0 %v953
    %1080 = vmatprep.subr.bf16.mxu0 0
    %1081 = vmatpush1.bf16.msra.mxu0 %v956
    %1082 = vmatprep.subr.bf16.mxu0 0
    %1083 = vmatpush1.bf16.msra.mxu0 %v959
    %1084 = vmatprep.subr.bf16.mxu0 0
    %1085 = vmatpush1.bf16.msra.mxu0 %v962
    %1086 = vmatprep.subr.bf16.mxu0 0
    %1087 = vmatpush1.bf16.msra.mxu0 %v965
    %1088 = vmatprep.subr.bf16.mxu0 0
    %1089 = vmatpush1.bf16.msra.mxu0 %v968
    %1090 = vmatprep.mubr.bf16.mxu0 %v680
    %1091 = vmatmul.mubr.bf16.gmra.mrb[0].mxu0 %v679
    %v1092 = vpop.f32.mrb[0].mxu0
    %v1093 = vadd.f32 %v757, %v1092
    %v1094 = vpop.f32.mrb[0].mxu0
    %v1095 = vpop.f32.mrb[0].mxu0
    %v1096 = vpop.f32.mrb[0].mxu0
    %1097 = vdwg.mxu0
    %v1098 = vmax.f32 %v1052, 0.0
    %v1099 = vmax.f32 %v1054, 0.0
    %v1100 = vmax.f32 %v1093, 0.0
    %v1101 = vpack.c.bf16 %v1098, %v1098
    %v1102 = vpack.c.bf16 %v1099, %v1099
    %v1103 = vpack.c.bf16 %v1100, %v1100
    %v1104 = vld [vmem:[#allocation8] sm:$0xf]
    %v1105 = vld [vmem:[#allocation8 + $0x4] sm:$0xf]
    %v1106 = vld [vmem:[#allocation8 + $0x8] sm:$0xf]
    %v1107 = vld [vmem:[#allocation8 + $0xc] sm:$0xf]
    %v1108 = vld [vmem:[#allocation8 + $0x10] sm:$0xf]
    %v1109 = vld [vmem:[#allocation8 + $0x14] sm:$0xf]
    %v1110 = vld [vmem:[#allocation8 + $0x18] sm:$0xf]
    %v1111 = vld [vmem:[#allocation8 + $0x1c] sm:$0xf]
    %v1112 = vld [vmem:[#allocation8 + $0x20] sm:$0xf]
    %v1113 = vld [vmem:[#allocation8 + $0x24] sm:$0xf]
    %v1114 = vld [vmem:[#allocation8 + $0x28] sm:$0xf]
    %v1115 = vld [vmem:[#allocation8 + $0x2c] sm:$0xf]
    %v1116 = vld [vmem:[#allocation8 + $0x30] sm:$0xf]
    %v1117 = vld [vmem:[#allocation8 + $0x34] sm:$0xf]
    %v1118 = vld [vmem:[#allocation8 + $0x38] sm:$0xf]
    %v1119 = vld [vmem:[#allocation8 + $0x3c] sm:$0xf]
    %v1120 = vld [vmem:[#allocation8 + $0x40] sm:$0xf]
    %v1121 = vld [vmem:[#allocation8 + $0x44] sm:$0xf]
    %v1122 = vld [vmem:[#allocation8 + $0x48] sm:$0xf]
    %v1123 = vld [vmem:[#allocation8 + $0x4c] sm:$0xf]
    %v1124 = vld [vmem:[#allocation8 + $0x50] sm:$0xf]
    %v1125 = vld [vmem:[#allocation8 + $0x54] sm:$0xf]
    %v1126 = vld [vmem:[#allocation8 + $0x58] sm:$0xf]
    %v1127 = vld [vmem:[#allocation8 + $0x5c] sm:$0xf]
    %v1128 = vld [vmem:[#allocation8 + $0x60] sm:$0xf]
    %v1129 = vld [vmem:[#allocation8 + $0x64] sm:$0xf]
    %v1130 = vld [vmem:[#allocation8 + $0x68] sm:$0xf]
    %v1131 = vld [vmem:[#allocation8 + $0x6c] sm:$0xf]
    %v1132 = vld [vmem:[#allocation8 + $0x70] sm:$0xf]
    %v1133 = vld [vmem:[#allocation8 + $0x74] sm:$0xf]
    %v1134 = vld [vmem:[#allocation8 + $0x78] sm:$0xf]
    %v1135 = vld [vmem:[#allocation8 + $0x7c] sm:$0xf]
    %v1136 = vld [vmem:[#allocation8 + $0x80] sm:$0xf]
    %v1137 = vld [vmem:[#allocation8 + $0x84] sm:$0xf]
    %v1138 = vld [vmem:[#allocation8 + $0x88] sm:$0xf]
    %v1139 = vld [vmem:[#allocation8 + $0x8c] sm:$0xf]
    %v1140 = vld [vmem:[#allocation8 + $0x90] sm:$0xf]
    %v1141 = vld [vmem:[#allocation8 + $0x94] sm:$0xf]
    %v1142 = vld [vmem:[#allocation8 + $0x98] sm:$0xf]
    %v1143 = vld [vmem:[#allocation8 + $0x9c] sm:$0xf]
    %v1144 = vld [vmem:[#allocation8 + $0xa0] sm:$0xf]
    %v1145 = vld [vmem:[#allocation8 + $0xa4] sm:$0xf]
    %v1146 = vld [vmem:[#allocation8 + $0xa8] sm:$0xf]
    %v1147 = vld [vmem:[#allocation8 + $0xac] sm:$0xf]
    %v1148 = vld [vmem:[#allocation8 + $0xb0] sm:$0xf]
    %v1149 = vld [vmem:[#allocation8 + $0xb4] sm:$0xf]
    %v1150 = vld [vmem:[#allocation8 + $0xb8] sm:$0xf]
    %v1151 = vld [vmem:[#allocation8 + $0xbc] sm:$0xf]
    %v1200 = vunpack.c.l.b16 %v1104
    %v1201 = vunpack.c.l.b16 %v1105
    %v1202 = vunpack.c.l.b16 %v1106
    %v1203 = vunpack.c.l.b16 %v1107
    %v1204 = vunpack.c.l.b16 %v1108
    %v1205 = vunpack.c.l.b16 %v1109
    %v1206 = vunpack.c.l.b16 %v1110
    %v1207 = vunpack.c.l.b16 %v1111
    %v1208 = vunpack.c.l.b16 %v1112
    %v1209 = vunpack.c.l.b16 %v1113
    %v1210 = vunpack.c.l.b16 %v1114
    %v1211 = vunpack.c.l.b16 %v1115
    %v1212 = vunpack.c.l.b16 %v1116
    %v1213 = vunpack.c.l.b16 %v1117
    %v1214 = vunpack.c.l.b16 %v1118
    %v1215 = vunpack.c.l.b16 %v1119
    %v1216 = vunpack.c.l.b16 %v1120
    %v1217 = vunpack.c.l.b16 %v1121
    %v1218 = vunpack.c.l.b16 %v1122
    %v1219 = vunpack.c.l.b16 %v1123
    %v1220 = vunpack.c.l.b16 %v1124
    %v1221 = vunpack.c.l.b16 %v1125
    %v1222 = vunpack.c.l.b16 %v1126
    %v1223 = vunpack.c.l.b16 %v1127
    %v1224 = vunpack.c.l.b16 %v1128
    %v1225 = vunpack.c.l.b16 %v1129
    %v1226 = vunpack.c.l.b16 %v1130
    %v1227 = vunpack.c.l.b16 %v1131
    %v1228 = vunpack.c.l.b16 %v1132
    %v1229 = vunpack.c.l.b16 %v1133
    %v1230 = vunpack.c.l.b16 %v1134
    %v1231 = vunpack.c.l.b16 %v1135
    %v1232 = vunpack.c.l.b16 %v1136
    %v1233 = vunpack.c.l.b16 %v1137
    %v1234 = vunpack.c.l.b16 %v1138
    %v1235 = vunpack.c.l.b16 %v1139
    %v1236 = vunpack.c.l.b16 %v1140
    %v1237 = vunpack.c.l.b16 %v1141
    %v1238 = vunpack.c.l.b16 %v1142
    %v1239 = vunpack.c.l.b16 %v1143
    %v1240 = vunpack.c.l.b16 %v1144
    %v1241 = vunpack.c.l.b16 %v1145
    %v1242 = vunpack.c.l.b16 %v1146
    %v1243 = vunpack.c.l.b16 %v1147
    %v1244 = vunpack.c.l.b16 %v1148
    %v1245 = vunpack.c.l.b16 %v1149
    %v1246 = vunpack.c.l.b16 %v1150
    %v1247 = vunpack.c.l.b16 %v1151
    %v1248 = vpack.c.b16 %v1201, %v1200
    %v1249 = vpack.c.b16 %v1203, %v1202
    %v1250 = vpack.c.b16 %v1205, %v1204
    %v1251 = vpack.c.b16 %v1207, %v1206
    %v1252 = vpack.c.b16 %v1209, %v1208
    %v1253 = vpack.c.b16 %v1211, %v1210
    %v1254 = vpack.c.b16 %v1213, %v1212
    %v1255 = vpack.c.b16 %v1215, %v1214
    %v1256 = vpack.c.b16 %v1217, %v1216
    %v1257 = vpack.c.b16 %v1219, %v1218
    %v1258 = vpack.c.b16 %v1221, %v1220
    %v1259 = vpack.c.b16 %v1223, %v1222
    %v1260 = vpack.c.b16 %v1225, %v1224
    %v1261 = vpack.c.b16 %v1227, %v1226
    %v1262 = vpack.c.b16 %v1229, %v1228
    %v1263 = vpack.c.b16 %v1231, %v1230
    %v1264 = vpack.c.b16 %v1233, %v1232
    %v1265 = vpack.c.b16 %v1235, %v1234
    %v1266 = vpack.c.b16 %v1237, %v1236
    %v1267 = vpack.c.b16 %v1239, %v1238
    %v1268 = vpack.c.b16 %v1241, %v1240
    %v1269 = vpack.c.b16 %v1243, %v1242
    %v1270 = vpack.c.b16 %v1245, %v1244
    %v1271 = vpack.c.b16 %v1247, %v1246
    %1296 = vmatprep.subr.bf16.mxu0 0
    %1297 = vmatpush1.bf16.msra.mxu0 %v1248
    %1298 = vmatprep.subr.bf16.mxu0 0
    %1299 = vmatpush1.bf16.msra.mxu0 %v1249
    %1300 = vmatprep.subr.bf16.mxu0 0
    %1301 = vmatpush1.bf16.msra.mxu0 %v1250
    %1302 = vmatprep.subr.bf16.mxu0 0
    %1303 = vmatpush1.bf16.msra.mxu0 %v1251
    %1304 = vmatprep.subr.bf16.mxu0 0
    %1305 = vmatpush1.bf16.msra.mxu0 %v1252
    %1306 = vmatprep.subr.bf16.mxu0 0
    %1307 = vmatpush1.bf16.msra.mxu0 %v1253
    %1308 = vmatprep.subr.bf16.mxu0 0
    %1309 = vmatpush1.bf16.msra.mxu0 %v1254
    %1310 = vmatprep.subr.bf16.mxu0 0
    %1311 = vmatpush1.bf16.msra.mxu0 %v1255
    %1312 = vmatprep.subr.bf16.mxu0 0
    %1313 = vmatpush1.bf16.msra.mxu0 %v1256
    %1314 = vmatprep.subr.bf16.mxu0 0
    %1315 = vmatpush1.bf16.msra.mxu0 %v1257
    %1316 = vmatprep.subr.bf16.mxu0 0
    %1317 = vmatpush1.bf16.msra.mxu0 %v1258
    %1318 = vmatprep.subr.bf16.mxu0 0
    %1319 = vmatpush1.bf16.msra.mxu0 %v1259
    %1320 = vmatprep.subr.bf16.mxu0 0
    %1321 = vmatpush1.bf16.msra.mxu0 %v1260
    %1322 = vmatprep.subr.bf16.mxu0 0
    %1323 = vmatpush1.bf16.msra.mxu0 %v1261
    %1324 = vmatprep.subr.bf16.mxu0 0
    %1325 = vmatpush1.bf16.msra.mxu0 %v1262
    %1326 = vmatprep.subr.bf16.mxu0 0
    %1327 = vmatpush1.bf16.msra.mxu0 %v1263
    %1328 = vmatprep.mubr.bf16.mxu0 %v1102
    %1329 = vmatmul.mubr.bf16.gmra.mrb[0].mxu0 %v1101
    %v1330 = vpop.f32.mrb[0].mxu0
    %v1331 = vadd.f32 %v84, %v1330
    %v1332 = vpop.f32.mrb[0].mxu0
    %v1333 = vpop.f32.mrb[0].mxu0
    %v1334 = vpop.f32.mrb[0].mxu0
    %1335 = vdwg.mxu0
    %1336 = vmatprep.subr.bf16.mxu0 0
    %1337 = vmatpush1.bf16.msra.mxu0 %v1264
    %1338 = vmatprep.subr.bf16.mxu0 0
    %1339 = vmatpush1.bf16.msra.mxu0 %v1265
    %1340 = vmatprep.subr.bf16.mxu0 0
    %1341 = vmatpush1.bf16.msra.mxu0 %v1266
    %1342 = vmatprep.subr.bf16.mxu0 0
    %1343 = vmatpush1.bf16.msra.mxu0 %v1267
    %1344 = vmatprep.subr.bf16.mxu0 0
    %1345 = vmatpush1.bf16.msra.mxu0 %v1268
    %1346 = vmatprep.subr.bf16.mxu0 0
    %1347 = vmatpush1.bf16.msra.mxu0 %v1269
    %1348 = vmatprep.subr.bf16.mxu0 0
    %1349 = vmatpush1.bf16.msra.mxu0 %v1270
    %1350 = vmatprep.subr.bf16.mxu0 0
    %1351 = vmatpush1.bf16.msra.mxu0 %v1271
    %1352 = vmatprep.subr.bf16.mxu0 0
    %1353 = vmatpush1.bf16.msra.mxu0 0
    %1354 = vmatprep.subr.bf16.mxu0 0
    %1355 = vmatpush1.bf16.msra.mxu0 0
    %1356 = vmatprep.subr.bf16.mxu0 0
    %1357 = vmatpush1.bf16.msra.mxu0 0
    %1358 = vmatprep.subr.bf16.mxu0 0
    %1359 = vmatpush1.bf16.msra.mxu0 0
    %1360 = vmatprep.subr.bf16.mxu0 0
    %1361 = vmatpush1.bf16.msra.mxu0 0
    %1362 = vmatprep.subr.bf16.mxu0 0
    %1363 = vmatpush1.bf16.msra.mxu0 0
    %1364 = vmatprep.subr.bf16.mxu0 0
    %1365 = vmatpush1.bf16.msra.mxu0 0
    %1366 = vmatprep.subr.bf16.mxu0 0
    %1367 = vmatpush1.bf16.msra.mxu0 0
    %1368 = vmatprep.mubr.bf16.mxu0 0
    %1369 = vmatmul.mubr.bf16.gmra.mrb[0].mxu0 %v1103
    %v1370 = vpop.f32.mrb[0].mxu0
    %v1371 = vadd.f32 %v1331, %v1370
    %v1372 = vpop.f32.mrb[0].mxu0
    %v1373 = vpop.f32.mrb[0].mxu0
    %v1374 = vpop.f32.mrb[0].mxu0
    %1375 = vdwg.mxu0
    %v1376 = vmax.f32 %v1371, 0.0
    %v1377 = vpack.c.bf16 %v1376, %v1376
    %v1378 = vld [vmem:[#allocation8 + $0xc0] sm:$0xf]
    %v1379 = vld [vmem:[#allocation8 + $0xc4] sm:$0xf]
    %v1380 = vld [vmem:[#allocation8 + $0xc8] sm:$0xf]
    %v1381 = vld [vmem:[#allocation8 + $0xcc] sm:$0xf]
    %v1382 = vld [vmem:[#allocation8 + $0xd0] sm:$0xf]
    %v1383 = vld [vmem:[#allocation8 + $0xd4] sm:$0xf]
    %v1384 = vld [vmem:[#allocation8 + $0xd8] sm:$0xf]
    %v1385 = vld [vmem:[#allocation8 + $0xdc] sm:$0xf]
    %v1386 = vld [vmem:[#allocation8 + $0xe0] sm:$0xf]
    %v1387 = vld [vmem:[#allocation8 + $0xe4] sm:$0xf]
    %v1388 = vld [vmem:[#allocation8 + $0xe8] sm:$0xf]
    %v1389 = vld [vmem:[#allocation8 + $0xec] sm:$0xf]
    %v1390 = vld [vmem:[#allocation8 + $0xf0] sm:$0xf]
    %v1391 = vld [vmem:[#allocation8 + $0xf4] sm:$0xf]
    %v1392 = vld [vmem:[#allocation8 + $0xf8] sm:$0xf]
    %v1393 = vld [vmem:[#allocation8 + $0xfc] sm:$0xf]
    %v1410 = vunpack.c.l.b16 %v1378
    %v1411 = vunpack.c.l.b16 %v1379
    %v1412 = vunpack.c.l.b16 %v1380
    %v1413 = vunpack.c.l.b16 %v1381
    %v1414 = vunpack.c.l.b16 %v1382
    %v1415 = vunpack.c.l.b16 %v1383
    %v1416 = vunpack.c.l.b16 %v1384
    %v1417 = vunpack.c.l.b16 %v1385
    %v1418 = vunpack.c.l.b16 %v1386
    %v1419 = vunpack.c.l.b16 %v1387
    %v1420 = vunpack.c.l.b16 %v1388
    %v1421 = vunpack.c.l.b16 %v1389
    %v1422 = vunpack.c.l.b16 %v1390
    %v1423 = vunpack.c.l.b16 %v1391
    %v1424 = vunpack.c.l.b16 %v1392
    %v1425 = vunpack.c.l.b16 %v1393
    %v1426 = vpack.c.b16 %v1411, %v1410
    %v1427 = vpack.c.b16 %v1413, %v1412
    %v1428 = vpack.c.b16 %v1415, %v1414
    %v1429 = vpack.c.b16 %v1417, %v1416
    %v1430 = vpack.c.b16 %v1419, %v1418
    %v1431 = vpack.c.b16 %v1421, %v1420
    %v1432 = vpack.c.b16 %v1423, %v1422
    %v1433 = vpack.c.b16 %v1425, %v1424
    %1442 = vmatprep.subr.bf16.mxu0 0
    %1443 = vmatpush1.bf16.msra.mxu0 %v1426
    %1444 = vmatprep.subr.bf16.mxu0 0
    %1445 = vmatpush1.bf16.msra.mxu0 %v1427
    %1446 = vmatprep.subr.bf16.mxu0 0
    %1447 = vmatpush1.bf16.msra.mxu0 %v1428
    %1448 = vmatprep.subr.bf16.mxu0 0
    %1449 = vmatpush1.bf16.msra.mxu0 %v1429
    %1450 = vmatprep.subr.bf16.mxu0 0
    %1451 = vmatpush1.bf16.msra.mxu0 %v1430
    %1452 = vmatprep.subr.bf16.mxu0 0
    %1453 = vmatpush1.bf16.msra.mxu0 %v1431
    %1454 = vmatprep.subr.bf16.mxu0 0
    %1455 = vmatpush1.bf16.msra.mxu0 %v1432
    %1456 = vmatprep.subr.bf16.mxu0 0
    %1457 = vmatpush1.bf16.msra.mxu0 %v1433
    %1458 = vmatprep.subr.bf16.mxu0 0
    %1459 = vmatpush1.bf16.msra.mxu0 0
    %1460 = vmatprep.subr.bf16.mxu0 0
    %1461 = vmatpush1.bf16.msra.mxu0 0
    %1462 = vmatprep.subr.bf16.mxu0 0
    %1463 = vmatpush1.bf16.msra.mxu0 0
    %1464 = vmatprep.subr.bf16.mxu0 0
    %1465 = vmatpush1.bf16.msra.mxu0 0
    %1466 = vmatprep.subr.bf16.mxu0 0
    %1467 = vmatpush1.bf16.msra.mxu0 0
    %1468 = vmatprep.subr.bf16.mxu0 0
    %1469 = vmatpush1.bf16.msra.mxu0 0
    %1470 = vmatprep.subr.bf16.mxu0 0
    %1471 = vmatpush1.bf16.msra.mxu0 0
    %1472 = vmatprep.subr.bf16.mxu0 0
    %1473 = vmatpush1.bf16.msra.mxu0 0
    %1474 = vmatprep.mubr.bf16.mxu0 0
    %1475 = vmatmul.mubr.bf16.gmra.mrb[0].mxu0 %v1377
    %v1476 = vpop.f32.mrb[0].mxu0
    %v1477 = vadd.f32 %v85, %v1476
    %v1478 = vpop.f32.mrb[0].mxu0
    %v1479 = vpop.f32.mrb[0].mxu0
    %v1480 = vpop.f32.mrb[0].mxu0
    %1481 = vdwg.mxu0
    %vm1482 = vcmask 64512
    %1483 = vst.msk [vmem:[#allocation10] sm:$0xff] %vm1482, %v1477
    // Predicated region
    $region38: #{tpu_custom_call.1} parent=1 // pred_check
      _
    $region39: #{tpu_custom_call.1} parent=1 // pred_check_branch
      %1485 = sbr.rel (0) target = $region41
    $region40: #{tpu_custom_call.1} parent=1 // pred_region
      %s1487 = ssub.s32 128, 128
      %1488 = vsyncadd [#allocation4], %s1487
      %s1490 = sshll.u32 [#allocation10], 4
      %s1491 = int_to_ptr.vmem [resolvable:$true] %s1490
      %1493 = dma.vmem_to_hbm [thread:$0]  %s1491, 128, %s5, [#allocation4]
    $region41: #{tpu_custom_call.1} parent=1 // pred_fallthru
      _
    // Predicated region
    $region42: #{tpu_custom_call.1} parent=1 // pred_check
      _
    $region43: #{tpu_custom_call.1} parent=1 // pred_check_branch
      %1495 = sbr.rel (0) target = $region45
    $region44: #{tpu_custom_call.1} parent=1 // pred_region
      %1496 = dma.done [#allocation4], 128
    $region45: #{tpu_custom_call.1} parent=1 // pred_fallthru
      _
    %1497 = vsyncpa [#allocation3], 1
    %1498 = vsyncpa [#allocation6], 1
    %1499 = vsyncpa [#allocation9], 1
    %1500 = vsyncpa [#allocation4], 1

</llo_original>
